<compile_context>
chip_gen: v7x
topology: tpu7x:2x2x1
jax: 0.10.0
libtpu: 0.0.40
codegen_flags: <defaults>
</compile_context>

<pallas_src>
import functools

import jax
import jax.numpy as jnp
from jax.experimental import pallas as pl
from jax.experimental.pallas import tpu as pltpu


def _round_up(x, m):
    return ((x + m - 1) // m) * m


@functools.lru_cache(maxsize=None)
def _vmem_budget_bytes():
    """Generation-aware cap for vmem_limit_bytes (headroom for compiler
    scratch): ~96 MiB on 128 MiB parts (v5e/v6e), ~48 MiB on 64 MiB v7x."""
    try:
        cap = pltpu.get_tpu_info().vmem_capacity_bytes
    except Exception:  # interpret mode / older jax -> conservative (v7x) value
        cap = 64 * 1024 * 1024
    return int(min(cap * 3 // 4, 96 * 1024 * 1024))


def _dim_tiling(n, tm_max, tk_max):
    """(padded size, row tile, k tile) for a dimension that appears both as the
    row dim of one adjacency rectangle and the contraction dim of the other.
    tm_max / tk_max are powers of two with tm_max <= tk_max, so the padding
    unit never exceeds max(tm, tk) (no lcm blow-up)."""
    n128 = _round_up(n, 128)
    if n128 <= tm_max:
        return n128, n128, n128            # single block in both roles
    pad = _round_up(n128, tm_max)
    if n128 <= tk_max:
        return pad, tm_max, pad            # single k block
    tk = tk_max
    while tk > tm_max and pad % tk != 0:   # largest pow2 <= tk_max dividing pad
        tk //= 2
    return pad, tm_max, tk


# ----------------------------------------------------------------------------
# Kernels
# ----------------------------------------------------------------------------
def _layer_kernel(adj_ref, ego_ref, acc_in_ref, side_ref, acc_out_ref, psum_ref):
    """side = adj @ ego (f32 VMEM scratch accumulation over k, emitted in the
    compute dtype); acc_out = acc_in + side, written on the last k step."""
    k = pl.program_id(1)
    part = jnp.dot(adj_ref[...], ego_ref[...], preferred_element_type=jnp.float32)

    @pl.when(k == 0)
    def _():
        psum_ref[...] = part

    @pl.when(k > 0)
    def _():
        psum_ref[...] += part

    @pl.when(k == pl.num_programs(1) - 1)
    def _():
        side_ref[...] = psum_ref[...].astype(side_ref.dtype)
        acc_out_ref[...] = acc_in_ref[...] + psum_ref[...]


def _last_layer_kernel(adj_ref, ego_ref, acc_in_ref, out_ref, *, inv_layers):
    """Final layer: out = (acc_in + adj @ ego) * inv_layers.  The propagated
    embeddings are never consumed after the last layer, so the `side` HBM
    writeback is skipped and the 1/(L+1) mean is folded in."""
    k = pl.program_id(1)
    part = jnp.dot(adj_ref[...], ego_ref[...], preferred_element_type=jnp.float32)

    @pl.when(k == 0)
    def _():
        out_ref[...] = acc_in_ref[...] + part

    @pl.when(k > 0)
    def _():
        out_ref[...] += part

    @pl.when(k == pl.num_programs(1) - 1)
    def _():
        out_ref[...] *= jnp.float32(inv_layers)


# ----------------------------------------------------------------------------
# pallas_call wrapper
# ----------------------------------------------------------------------------
def _propagate_call(adj_p, ego_p, acc_p, *, tm, tk, last, inv_layers=1.0):
    """One propagation step on padded, lane-dense operands.

    adj_p: [Rp, Kp] compute dtype,  ego_p: [Kp, Dp] compute dtype,
    acc_p: [Rp, Dp] f32 running layer-sum (aliased in place to the output).
    Returns out (last=True) or (side, acc_out) otherwise.
    """
    rp, kp = adj_p.shape
    kp2, dp = ego_p.shape
    assert kp == kp2 and rp % tm == 0 and kp % tk == 0
    grid = (rp // tm, kp // tk)

    in_specs = [
        pl.BlockSpec((tm, tk), lambda i, k: (i, k)),   # adjacency tile
        pl.BlockSpec((tk, dp), lambda i, k: (k, 0)),   # ego tile (lane-dense D)
        pl.BlockSpec((tm, dp), lambda i, k: (i, 0)),   # running layer-sum (f32)
    ]
    out_spec = pl.BlockSpec((tm, dp), lambda i, k: (i, 0))

    adj_b = adj_p.dtype.itemsize
    ego_b = ego_p.dtype.itemsize
    est = (2 * tm * tk * adj_b                           # adj (double-buffered)
           + 2 * tk * dp * ego_b                         # ego
           + 2 * tm * dp * 4                             # acc_in
           + 2 * tm * dp * 4                             # acc_out / out
           + (0 if last else 2 * tm * dp * ego_b + tm * dp * 4))  # side + psum
    vmem_limit = int(max(32 * 1024 * 1024, min(2 * est, _vmem_budget_bytes())))

    cparams = pltpu.CompilerParams(
        dimension_semantics=("parallel", "arbitrary"),
        vmem_limit_bytes=vmem_limit,
    )

    if last:
        return pl.pallas_call(
            functools.partial(_last_layer_kernel, inv_layers=inv_layers),
            out_shape=jax.ShapeDtypeStruct((rp, dp), jnp.float32),
            grid_spec=pltpu.PrefetchScalarGridSpec(
                num_scalar_prefetch=0,
                grid=grid,
                in_specs=in_specs,
                out_specs=out_spec,
            ),
            input_output_aliases={2: 0},                 # acc_in -> out, in place
            compiler_params=cparams,
        )(adj_p, ego_p, acc_p)

    return pl.pallas_call(
        _layer_kernel,
        out_shape=(
            jax.ShapeDtypeStruct((rp, dp), ego_p.dtype),   # side (next ego)
            jax.ShapeDtypeStruct((rp, dp), jnp.float32),   # updated layer-sum
        ),
        grid_spec=pltpu.PrefetchScalarGridSpec(
            num_scalar_prefetch=0,
            grid=grid,
            in_specs=in_specs,
            out_specs=[out_spec, out_spec],
            scratch_shapes=[pltpu.VMEM((tm, dp), jnp.float32)],
        ),
        input_output_aliases={2: 1},                     # acc_in -> acc_out
        compiler_params=cparams,
    )(adj_p, ego_p, acc_p)


# ----------------------------------------------------------------------------
# Forward (jitted on array args; embeddings are traced, not baked in)
# ----------------------------------------------------------------------------
def _lightgcn_forward(user_emb, item_emb, adj, *, n_ui_layers, compute_dtype,
                      tm_max, tk_max, bipartite):
    nu, d = user_emb.shape
    ni = item_emb.shape[0]
    dp = _round_up(d, 128)
    inv = 1.0 / float(n_ui_layers + 1)

    if bipartite:
        nu_pad, tm_u, tk_u = _dim_tiling(nu, tm_max, tk_max)
        ni_pad, tm_i, tk_i = _dim_tiling(ni, tm_max, tk_max)

        # Non-zero rectangles only; cast BEFORE padding (no padded f32 N^2 copy).
        adj_ui = jnp.pad(adj[:nu, nu:].astype(compute_dtype),
                         ((0, nu_pad - nu), (0, ni_pad - ni)))
        adj_iu = jnp.pad(adj[nu:, :nu].astype(compute_dtype),
                         ((0, ni_pad - ni), (0, nu_pad - nu)))

        acc_u = jnp.pad(user_emb.astype(jnp.float32),
                        ((0, nu_pad - nu), (0, dp - d)))
        acc_i = jnp.pad(item_emb.astype(jnp.float32),
                        ((0, ni_pad - ni), (0, dp - d)))
        ego_u = acc_u.astype(compute_dtype)
        ego_i = acc_i.astype(compute_dtype)

        for layer in range(n_ui_layers):
            if layer == n_ui_layers - 1:
                acc_u = _propagate_call(adj_ui, ego_i, acc_u, tm=tm_u, tk=tk_i,
                                        last=True, inv_layers=inv)
                acc_i = _propagate_call(adj_iu, ego_u, acc_i, tm=tm_i, tk=tk_u,
                                        last=True, inv_layers=inv)
            else:
                new_u, acc_u = _propagate_call(adj_ui, ego_i, acc_u,
                                               tm=tm_u, tk=tk_i, last=False)
                new_i, acc_i = _propagate_call(adj_iu, ego_u, acc_i,
                                               tm=tm_i, tk=tk_u, last=False)
                ego_u, ego_i = new_u, new_i
        return acc_u[:nu, :d], acc_i[:ni, :d]

    # Dense fallback for adjacencies without the bipartite zero quadrants.
    n = nu + ni
    n_pad, tm_n, tk_n = _dim_tiling(n, tm_max, tk_max)
    adj_p = jnp.pad(adj.astype(compute_dtype), ((0, n_pad - n), (0, n_pad - n)))
    acc = jnp.pad(
        jnp.concatenate((user_emb, item_emb), axis=0).astype(jnp.float32),
        ((0, n_pad - n), (0, dp - d)))
    ego = acc.astype(compute_dtype)
    for layer in range(n_ui_layers):
        if layer == n_ui_layers - 1:
            acc = _propagate_call(adj_p, ego, acc, tm=tm_n, tk=tk_n,
                                  last=True, inv_layers=inv)
        else:
            ego, acc = _propagate_call(adj_p, ego, acc, tm=tm_n, tk=tk_n,
                                       last=False)
    all_emb = acc[:n, :d]
    return all_emb[:nu], all_emb[nu:]


_lightgcn_forward_jit = jax.jit(
    _lightgcn_forward,
    static_argnames=("n_ui_layers", "compute_dtype", "tm_max", "tk_max",
                     "bipartite"),
)


# ----------------------------------------------------------------------------
# Module
# ----------------------------------------------------------------------------
class LightGCNPallas:
    """JAX/Pallas re-implementation of the PyTorch LightGCN module."""

    def __init__(self, n_users, n_items, embedding_dim, weight_size, key, *,
                 tm=1024, tk=4096):
        assert tm >= 128 and tk >= tm
        assert (tm & (tm - 1)) == 0 and (tk & (tk - 1)) == 0, \
            "tile sizes must be powers of two"
        self.n_users = n_users
        self.n_items = n_items
        self.embedding_dim = embedding_dim
        self.n_ui_layers = len(weight_size)
        self.tm = tm
        self.tk = tk

        ku, ki = jax.random.split(key)
        # xavier_uniform: bound = sqrt(6 / (fan_in + fan_out))
        bu = (6.0 / (n_users + embedding_dim)) ** 0.5
        bi = (6.0 / (n_items + embedding_dim)) ** 0.5
        self.user_embedding = jax.random.uniform(
            ku, (n_users, embedding_dim), jnp.float32, -bu, bu)
        self.item_id_embedding = jax.random.uniform(
            ki, (n_items, embedding_dim), jnp.float32, -bi, bi)

    def forward(self, adj, compute_dtype=jnp.bfloat16, bipartite=True):
        """bipartite=True assumes the standard LightGCN normalized adjacency
        (zero user-user / item-item quadrants); set False for arbitrary adj."""
        return _lightgcn_forward_jit(
            self.user_embedding, self.item_id_embedding, adj,
            n_ui_layers=self.n_ui_layers, compute_dtype=compute_dtype,
            tm_max=self.tm, tk_max=self.tk, bipartite=bipartite)

    def forward_ref(self, adj):
        """Pure-JAX f32 reference for correctness checking."""
        ego = jnp.concatenate((self.user_embedding, self.item_id_embedding),
                              axis=0)
        outs = [ego]
        for _ in range(self.n_ui_layers):
            ego = adj @ ego
            outs.append(ego)
        all_embeddings = jnp.stack(outs, axis=1).mean(axis=1)
        return all_embeddings[:self.n_users], all_embeddings[self.n_users:]


def build_norm_adj(n_users, n_items, key):
    """Deterministic symmetric-normalized bipartite adjacency (dense)."""
    r = (jax.random.uniform(key, (n_users, n_items)) < 0.05).astype(jnp.float32)
    n = n_users + n_items
    adj = jnp.zeros((n, n), jnp.float32)
    adj = adj.at[:n_users, n_users:].set(r)
    adj = adj.at[n_users:, :n_users].set(r.T)
    deg = adj.sum(axis=1)
    d_inv_sqrt = jnp.where(deg > 0, deg ** -0.5, 0.0)
    return (d_inv_sqrt[:, None] * adj) * d_inv_sqrt[None, :]


if __name__ == "__main__":
    key = jax.random.PRNGKey(0)
    k_model, k_adj = jax.random.split(key)

    n_users, n_items, embedding_dim = 128, 192, 64
    weight_size = [64, 64]  # => 2 propagation layers

    model = LightGCNPallas(n_users, n_items, embedding_dim, weight_size, k_model)
    adj = build_norm_adj(n_users, n_items, k_adj)

    u_ref, i_ref = model.forward_ref(adj)

    # Exact path: f32 compute, bipartite split, tight tolerance vs pure-JAX ref.
    u32, i32 = jax.block_until_ready(model.forward(adj, jnp.float32))
    assert u32.shape == (n_users, embedding_dim)
    assert i32.shape == (n_items, embedding_dim)
    assert jnp.allclose(u32, u_ref, atol=1e-5, rtol=1e-5)
    assert jnp.allclose(i32, i_ref, atol=1e-5, rtol=1e-5)

    # Dense (non-bipartite) fallback path, f32.
    u_d, i_d = jax.block_until_ready(
        model.forward(adj, jnp.float32, bipartite=False))
    assert jnp.allclose(u_d, u_ref, atol=1e-5, rtol=1e-5)
    assert jnp.allclose(i_d, i_ref, atol=1e-5, rtol=1e-5)

    # Fast path: bf16 adjacency/ego stream, f32 accumulation (default config).
    ubf, ibf = jax.block_until_ready(model.forward(adj))
    assert ubf.shape == (n_users, embedding_dim)
    assert ibf.shape == (n_items, embedding_dim)
    assert jnp.allclose(ubf, u_ref, atol=1e-2, rtol=1e-2)
    assert jnp.allclose(ibf, i_ref, atol=1e-2, rtol=1e-2)

    print("KERNEL_OK")
</pallas_src>

<mosaic_0001>
module attributes {stable_mosaic.version = 11 : i64} {
  func.func @_layer_kernel(%arg0: i32, %arg1: i32, %arg2: memref<256x128xf32, #tpu.memory_space<vmem>>, %arg3: memref<128x128xf32, #tpu.memory_space<vmem>>, %arg4: memref<256x128xf32, #tpu.memory_space<vmem>>, %arg5: memref<256x128xf32, #tpu.memory_space<vmem>>, %arg6: memref<256x128xf32, #tpu.memory_space<vmem>>, %arg7: memref<256x128xf32, #tpu.memory_space<vmem>>) attributes {dimension_semantics = [#tpu.dimension_semantics<parallel>, #tpu.dimension_semantics<arbitrary>], iteration_bounds = array<i64: 1, 1>, scalar_prefetch = 0 : i64, scratch_operands = 1 : i64, tpu.core_type = #tpu.core_type<tc>, window_params = [{transform_indices = @transform_0, window_bounds = array<i64: 256, 128>}, {transform_indices = @transform_1, window_bounds = array<i64: 128, 128>}, {transform_indices = @transform_2, window_bounds = array<i64: 256, 128>}, {transform_indices = @transform_3, window_bounds = array<i64: 256, 128>}, {transform_indices = @transform_4, window_bounds = array<i64: 256, 128>}]} {
    %c0 = arith.constant 0 : index
    %c0_0 = arith.constant 0 : index
    %0 = vector.load %arg2[%c0, %c0_0] : memref<256x128xf32, #tpu.memory_space<vmem>>, vector<256x128xf32>
    %c0_1 = arith.constant 0 : index
    %c0_2 = arith.constant 0 : index
    %1 = vector.load %arg3[%c0_1, %c0_2] : memref<128x128xf32, #tpu.memory_space<vmem>>, vector<128x128xf32>
    %cst = arith.constant dense<0.000000e+00> : vector<256x128xf32>
    %2 = tpu.matmul %0, %1, %cst {dimension_numbers = #tpu.dot_dimension_numbers<[1], [0], [0], [1], [0, 0, 1, 1], [], []>} : vector<256x128xf32>, vector<128x128xf32>, vector<256x128xf32> -> vector<256x128xf32>
    %c0_i32 = arith.constant 0 : i32
    %3 = arith.cmpi eq, %arg1, %c0_i32 : i32
    %4 = arith.extui %3 : i1 to i32
    %c0_i32_3 = arith.constant 0 : i32
    %5 = arith.cmpi ne, %4, %c0_i32_3 : i32
    scf.if %5 {
      %c0_8 = arith.constant 0 : index
      %c0_9 = arith.constant 0 : index
      %12 = vector.load %arg7[%c0_8, %c0_9] : memref<256x128xf32, #tpu.memory_space<vmem>>, vector<256x128xf32>
      tpu.vector_store %arg7[%c0_8, %c0_9], %2 {strides = array<i32>} : memref<256x128xf32, #tpu.memory_space<vmem>>, vector<256x128xf32>,
    } else {
    }
    %c0_i32_4 = arith.constant 0 : i32
    %6 = arith.cmpi sgt, %arg1, %c0_i32_4 : i32
    %7 = arith.extui %6 : i1 to i32
    %c0_i32_5 = arith.constant 0 : i32
    %8 = arith.cmpi ne, %7, %c0_i32_5 : i32
    scf.if %8 {
      %c0_8 = arith.constant 0 : index
      %c0_9 = arith.constant 0 : index
      %12 = vector.load %arg7[%c0_8, %c0_9] : memref<256x128xf32, #tpu.memory_space<vmem>>, vector<256x128xf32>
      %13 = arith.addf %12, %2 : vector<256x128xf32>
      %c0_10 = arith.constant 0 : index
      %c0_11 = arith.constant 0 : index
      %14 = vector.load %arg7[%c0_10, %c0_11] : memref<256x128xf32, #tpu.memory_space<vmem>>, vector<256x128xf32>
      tpu.vector_store %arg7[%c0_10, %c0_11], %13 {strides = array<i32>} : memref<256x128xf32, #tpu.memory_space<vmem>>, vector<256x128xf32>,
    } else {
    }
    %c0_i32_6 = arith.constant 0 : i32
    %9 = arith.cmpi eq, %arg1, %c0_i32_6 : i32
    %10 = arith.extui %9 : i1 to i32
    %c0_i32_7 = arith.constant 0 : i32
    %11 = arith.cmpi ne, %10, %c0_i32_7 : i32
    scf.if %11 {
      %c0_8 = arith.constant 0 : index
      %c0_9 = arith.constant 0 : index
      %12 = vector.load %arg7[%c0_8, %c0_9] : memref<256x128xf32, #tpu.memory_space<vmem>>, vector<256x128xf32>
      %c0_10 = arith.constant 0 : index
      %c0_11 = arith.constant 0 : index
      %13 = vector.load %arg5[%c0_10, %c0_11] : memref<256x128xf32, #tpu.memory_space<vmem>>, vector<256x128xf32>
      tpu.vector_store %arg5[%c0_10, %c0_11], %12 {strides = array<i32>} : memref<256x128xf32, #tpu.memory_space<vmem>>, vector<256x128xf32>,
      %c0_12 = arith.constant 0 : index
      %c0_13 = arith.constant 0 : index
      %14 = vector.load %arg4[%c0_12, %c0_13] : memref<256x128xf32, #tpu.memory_space<vmem>>, vector<256x128xf32>
      %c0_14 = arith.constant 0 : index
      %c0_15 = arith.constant 0 : index
      %15 = vector.load %arg7[%c0_14, %c0_15] : memref<256x128xf32, #tpu.memory_space<vmem>>, vector<256x128xf32>
      %16 = arith.addf %14, %15 : vector<256x128xf32>
      %c0_16 = arith.constant 0 : index
      %c0_17 = arith.constant 0 : index
      %17 = vector.load %arg6[%c0_16, %c0_17] : memref<256x128xf32, #tpu.memory_space<vmem>>, vector<256x128xf32>
      tpu.vector_store %arg6[%c0_16, %c0_17], %16 {strides = array<i32>} : memref<256x128xf32, #tpu.memory_space<vmem>>, vector<256x128xf32>,
    } else {
    }
    return
  }
  func.func @transform_0(%arg0: i32, %arg1: i32) -> (i32, i32) {
    %c0_i32 = arith.constant 0 : i32
    return %arg0, %arg1 : i32, i32
  }
  func.func @transform_1(%arg0: i32, %arg1: i32) -> (i32, i32) {
    %c0_i32 = arith.constant 0 : i32
    %c0_i32_0 = arith.constant 0 : i32
    return %arg1, %c0_i32 : i32, i32
  }
  func.func @transform_2(%arg0: i32, %arg1: i32) -> (i32, i32) {
    %c0_i32 = arith.constant 0 : i32
    %c0_i32_0 = arith.constant 0 : i32
    return %arg0, %c0_i32 : i32, i32
  }
  func.func @transform_3(%arg0: i32, %arg1: i32) -> (i32, i32) {
    %c0_i32 = arith.constant 0 : i32
    %c0_i32_0 = arith.constant 0 : i32
    return %arg0, %c0_i32 : i32, i32
  }
  func.func @transform_4(%arg0: i32, %arg1: i32) -> (i32, i32) {
    %c0_i32 = arith.constant 0 : i32
    %c0_i32_0 = arith.constant 0 : i32
    return %arg0, %c0_i32 : i32, i32
  }
}

module attributes {stable_mosaic.version = 11 : i64} {
  func.func @_layer_kernel(%arg0: i32, %arg1: i32, %arg2: memref<128x256xf32, #tpu.memory_space<vmem>>, %arg3: memref<256x128xf32, #tpu.memory_space<vmem>>, %arg4: memref<128x128xf32, #tpu.memory_space<vmem>>, %arg5: memref<128x128xf32, #tpu.memory_space<vmem>>, %arg6: memref<128x128xf32, #tpu.memory_space<vmem>>, %arg7: memref<128x128xf32, #tpu.memory_space<vmem>>) attributes {dimension_semantics = [#tpu.dimension_semantics<parallel>, #tpu.dimension_semantics<arbitrary>], iteration_bounds = array<i64: 1, 1>, scalar_prefetch = 0 : i64, scratch_operands = 1 : i64, tpu.core_type = #tpu.core_type<tc>, window_params = [{transform_indices = @transform_0, window_bounds = array<i64: 128, 256>}, {transform_indices = @transform_1, window_bounds = array<i64: 256, 128>}, {transform_indices = @transform_2, window_bounds = array<i64: 128, 128>}, {transform_indices = @transform_3, window_bounds = array<i64: 128, 128>}, {transform_indices = @transform_4, window_bounds = array<i64: 128, 128>}]} {
    %c0 = arith.constant 0 : index
    %c0_0 = arith.constant 0 : index
    %0 = vector.load %arg2[%c0, %c0_0] : memref<128x256xf32, #tpu.memory_space<vmem>>, vector<128x256xf32>
    %c0_1 = arith.constant 0 : index
    %c0_2 = arith.constant 0 : index
    %1 = vector.load %arg3[%c0_1, %c0_2] : memref<256x128xf32, #tpu.memory_space<vmem>>, vector<256x128xf32>
    %cst = arith.constant dense<0.000000e+00> : vector<128x128xf32>
    %2 = tpu.matmul %0, %1, %cst {dimension_numbers = #tpu.dot_dimension_numbers<[1], [0], [0], [1], [0, 0, 1, 1], [], []>} : vector<128x256xf32>, vector<256x128xf32>, vector<128x128xf32> -> vector<128x128xf32>
    %c0_i32 = arith.constant 0 : i32
    %3 = arith.cmpi eq, %arg1, %c0_i32 : i32
    %4 = arith.extui %3 : i1 to i32
    %c0_i32_3 = arith.constant 0 : i32
    %5 = arith.cmpi ne, %4, %c0_i32_3 : i32
    scf.if %5 {
      %c0_8 = arith.constant 0 : index
      %c0_9 = arith.constant 0 : index
      %12 = vector.load %arg7[%c0_8, %c0_9] : memref<128x128xf32, #tpu.memory_space<vmem>>, vector<128x128xf32>
      tpu.vector_store %arg7[%c0_8, %c0_9], %2 {strides = array<i32>} : memref<128x128xf32, #tpu.memory_space<vmem>>, vector<128x128xf32>,
    } else {
    }
    %c0_i32_4 = arith.constant 0 : i32
    %6 = arith.cmpi sgt, %arg1, %c0_i32_4 : i32
    %7 = arith.extui %6 : i1 to i32
    %c0_i32_5 = arith.constant 0 : i32
    %8 = arith.cmpi ne, %7, %c0_i32_5 : i32
    scf.if %8 {
      %c0_8 = arith.constant 0 : index
      %c0_9 = arith.constant 0 : index
      %12 = vector.load %arg7[%c0_8, %c0_9] : memref<128x128xf32, #tpu.memory_space<vmem>>, vector<128x128xf32>
      %13 = arith.addf %12, %2 : vector<128x128xf32>
      %c0_10 = arith.constant 0 : index
      %c0_11 = arith.constant 0 : index
      %14 = vector.load %arg7[%c0_10, %c0_11] : memref<128x128xf32, #tpu.memory_space<vmem>>, vector<128x128xf32>
      tpu.vector_store %arg7[%c0_10, %c0_11], %13 {strides = array<i32>} : memref<128x128xf32, #tpu.memory_space<vmem>>, vector<128x128xf32>,
    } else {
    }
    %c0_i32_6 = arith.constant 0 : i32
    %9 = arith.cmpi eq, %arg1, %c0_i32_6 : i32
    %10 = arith.extui %9 : i1 to i32
    %c0_i32_7 = arith.constant 0 : i32
    %11 = arith.cmpi ne, %10, %c0_i32_7 : i32
    scf.if %11 {
      %c0_8 = arith.constant 0 : index
      %c0_9 = arith.constant 0 : index
      %12 = vector.load %arg7[%c0_8, %c0_9] : memref<128x128xf32, #tpu.memory_space<vmem>>, vector<128x128xf32>
      %c0_10 = arith.constant 0 : index
      %c0_11 = arith.constant 0 : index
      %13 = vector.load %arg5[%c0_10, %c0_11] : memref<128x128xf32, #tpu.memory_space<vmem>>, vector<128x128xf32>
      tpu.vector_store %arg5[%c0_10, %c0_11], %12 {strides = array<i32>} : memref<128x128xf32, #tpu.memory_space<vmem>>, vector<128x128xf32>,
      %c0_12 = arith.constant 0 : index
      %c0_13 = arith.constant 0 : index
      %14 = vector.load %arg4[%c0_12, %c0_13] : memref<128x128xf32, #tpu.memory_space<vmem>>, vector<128x128xf32>
      %c0_14 = arith.constant 0 : index
      %c0_15 = arith.constant 0 : index
      %15 = vector.load %arg7[%c0_14, %c0_15] : memref<128x128xf32, #tpu.memory_space<vmem>>, vector<128x128xf32>
      %16 = arith.addf %14, %15 : vector<128x128xf32>
      %c0_16 = arith.constant 0 : index
      %c0_17 = arith.constant 0 : index
      %17 = vector.load %arg6[%c0_16, %c0_17] : memref<128x128xf32, #tpu.memory_space<vmem>>, vector<128x128xf32>
      tpu.vector_store %arg6[%c0_16, %c0_17], %16 {strides = array<i32>} : memref<128x128xf32, #tpu.memory_space<vmem>>, vector<128x128xf32>,
    } else {
    }
    return
  }
  func.func @transform_0(%arg0: i32, %arg1: i32) -> (i32, i32) {
    %c0_i32 = arith.constant 0 : i32
    return %arg0, %arg1 : i32, i32
  }
  func.func @transform_1(%arg0: i32, %arg1: i32) -> (i32, i32) {
    %c0_i32 = arith.constant 0 : i32
    %c0_i32_0 = arith.constant 0 : i32
    return %arg1, %c0_i32 : i32, i32
  }
  func.func @transform_2(%arg0: i32, %arg1: i32) -> (i32, i32) {
    %c0_i32 = arith.constant 0 : i32
    %c0_i32_0 = arith.constant 0 : i32
    return %arg0, %c0_i32 : i32, i32
  }
  func.func @transform_3(%arg0: i32, %arg1: i32) -> (i32, i32) {
    %c0_i32 = arith.constant 0 : i32
    %c0_i32_0 = arith.constant 0 : i32
    return %arg0, %c0_i32 : i32, i32
  }
  func.func @transform_4(%arg0: i32, %arg1: i32) -> (i32, i32) {
    %c0_i32 = arith.constant 0 : i32
    %c0_i32_0 = arith.constant 0 : i32
    return %arg0, %c0_i32 : i32, i32
  }
}

module attributes {stable_mosaic.version = 11 : i64} {
  func.func @_last_layer_kernel(%arg0: i32, %arg1: i32, %arg2: memref<256x128xf32, #tpu.memory_space<vmem>>, %arg3: memref<128x128xf32, #tpu.memory_space<vmem>>, %arg4: memref<256x128xf32, #tpu.memory_space<vmem>>, %arg5: memref<256x128xf32, #tpu.memory_space<vmem>>) attributes {dimension_semantics = [#tpu.dimension_semantics<parallel>, #tpu.dimension_semantics<arbitrary>], iteration_bounds = array<i64: 1, 1>, scalar_prefetch = 0 : i64, scratch_operands = 0 : i64, tpu.core_type = #tpu.core_type<tc>, window_params = [{transform_indices = @transform_0, window_bounds = array<i64: 256, 128>}, {transform_indices = @transform_1, window_bounds = array<i64: 128, 128>}, {transform_indices = @transform_2, window_bounds = array<i64: 256, 128>}, {transform_indices = @transform_3, window_bounds = array<i64: 256, 128>}]} {
    %c0 = arith.constant 0 : index
    %c0_0 = arith.constant 0 : index
    %0 = vector.load %arg2[%c0, %c0_0] : memref<256x128xf32, #tpu.memory_space<vmem>>, vector<256x128xf32>
    %c0_1 = arith.constant 0 : index
    %c0_2 = arith.constant 0 : index
    %1 = vector.load %arg3[%c0_1, %c0_2] : memref<128x128xf32, #tpu.memory_space<vmem>>, vector<128x128xf32>
    %cst = arith.constant dense<0.000000e+00> : vector<256x128xf32>
    %2 = tpu.matmul %0, %1, %cst {dimension_numbers = #tpu.dot_dimension_numbers<[1], [0], [0], [1], [0, 0, 1, 1], [], []>} : vector<256x128xf32>, vector<128x128xf32>, vector<256x128xf32> -> vector<256x128xf32>
    %c0_i32 = arith.constant 0 : i32
    %3 = arith.cmpi eq, %arg1, %c0_i32 : i32
    %4 = arith.extui %3 : i1 to i32
    %c0_i32_3 = arith.constant 0 : i32
    %5 = arith.cmpi ne, %4, %c0_i32_3 : i32
    scf.if %5 {
      %c0_8 = arith.constant 0 : index
      %c0_9 = arith.constant 0 : index
      %12 = vector.load %arg4[%c0_8, %c0_9] : memref<256x128xf32, #tpu.memory_space<vmem>>, vector<256x128xf32>
      %13 = arith.addf %12, %2 : vector<256x128xf32>
      %c0_10 = arith.constant 0 : index
      %c0_11 = arith.constant 0 : index
      %14 = vector.load %arg5[%c0_10, %c0_11] : memref<256x128xf32, #tpu.memory_space<vmem>>, vector<256x128xf32>
      tpu.vector_store %arg5[%c0_10, %c0_11], %13 {strides = array<i32>} : memref<256x128xf32, #tpu.memory_space<vmem>>, vector<256x128xf32>,
    } else {
    }
    %c0_i32_4 = arith.constant 0 : i32
    %6 = arith.cmpi sgt, %arg1, %c0_i32_4 : i32
    %7 = arith.extui %6 : i1 to i32
    %c0_i32_5 = arith.constant 0 : i32
    %8 = arith.cmpi ne, %7, %c0_i32_5 : i32
    scf.if %8 {
      %c0_8 = arith.constant 0 : index
      %c0_9 = arith.constant 0 : index
      %12 = vector.load %arg5[%c0_8, %c0_9] : memref<256x128xf32, #tpu.memory_space<vmem>>, vector<256x128xf32>
      %13 = arith.addf %12, %2 : vector<256x128xf32>
      %c0_10 = arith.constant 0 : index
      %c0_11 = arith.constant 0 : index
      %14 = vector.load %arg5[%c0_10, %c0_11] : memref<256x128xf32, #tpu.memory_space<vmem>>, vector<256x128xf32>
      tpu.vector_store %arg5[%c0_10, %c0_11], %13 {strides = array<i32>} : memref<256x128xf32, #tpu.memory_space<vmem>>, vector<256x128xf32>,
    } else {
    }
    %c0_i32_6 = arith.constant 0 : i32
    %9 = arith.cmpi eq, %arg1, %c0_i32_6 : i32
    %10 = arith.extui %9 : i1 to i32
    %c0_i32_7 = arith.constant 0 : i32
    %11 = arith.cmpi ne, %10, %c0_i32_7 : i32
    scf.if %11 {
      %c0_8 = arith.constant 0 : index
      %c0_9 = arith.constant 0 : index
      %12 = vector.load %arg5[%c0_8, %c0_9] : memref<256x128xf32, #tpu.memory_space<vmem>>, vector<256x128xf32>
      %cst_10 = arith.constant 0.333333343 : f32
      %13 = vector.broadcast %cst_10 : f32 to vector<256x128xf32>
      %14 = arith.mulf %12, %13 : vector<256x128xf32>
      %c0_11 = arith.constant 0 : index
      %c0_12 = arith.constant 0 : index
      %15 = vector.load %arg5[%c0_11, %c0_12] : memref<256x128xf32, #tpu.memory_space<vmem>>, vector<256x128xf32>
      tpu.vector_store %arg5[%c0_11, %c0_12], %14 {strides = array<i32>} : memref<256x128xf32, #tpu.memory_space<vmem>>, vector<256x128xf32>,
    } else {
    }
    return
  }
  func.func @transform_0(%arg0: i32, %arg1: i32) -> (i32, i32) {
    %c0_i32 = arith.constant 0 : i32
    return %arg0, %arg1 : i32, i32
  }
  func.func @transform_1(%arg0: i32, %arg1: i32) -> (i32, i32) {
    %c0_i32 = arith.constant 0 : i32
    %c0_i32_0 = arith.constant 0 : i32
    return %arg1, %c0_i32 : i32, i32
  }
  func.func @transform_2(%arg0: i32, %arg1: i32) -> (i32, i32) {
    %c0_i32 = arith.constant 0 : i32
    %c0_i32_0 = arith.constant 0 : i32
    return %arg0, %c0_i32 : i32, i32
  }
  func.func @transform_3(%arg0: i32, %arg1: i32) -> (i32, i32) {
    %c0_i32 = arith.constant 0 : i32
    %c0_i32_0 = arith.constant 0 : i32
    return %arg0, %c0_i32 : i32, i32
  }
}

module attributes {stable_mosaic.version = 11 : i64} {
  func.func @_last_layer_kernel(%arg0: i32, %arg1: i32, %arg2: memref<128x256xf32, #tpu.memory_space<vmem>>, %arg3: memref<256x128xf32, #tpu.memory_space<vmem>>, %arg4: memref<128x128xf32, #tpu.memory_space<vmem>>, %arg5: memref<128x128xf32, #tpu.memory_space<vmem>>) attributes {dimension_semantics = [#tpu.dimension_semantics<parallel>, #tpu.dimension_semantics<arbitrary>], iteration_bounds = array<i64: 1, 1>, scalar_prefetch = 0 : i64, scratch_operands = 0 : i64, tpu.core_type = #tpu.core_type<tc>, window_params = [{transform_indices = @transform_0, window_bounds = array<i64: 128, 256>}, {transform_indices = @transform_1, window_bounds = array<i64: 256, 128>}, {transform_indices = @transform_2, window_bounds = array<i64: 128, 128>}, {transform_indices = @transform_3, window_bounds = array<i64: 128, 128>}]} {
    %c0 = arith.constant 0 : index
    %c0_0 = arith.constant 0 : index
    %0 = vector.load %arg2[%c0, %c0_0] : memref<128x256xf32, #tpu.memory_space<vmem>>, vector<128x256xf32>
    %c0_1 = arith.constant 0 : index
    %c0_2 = arith.constant 0 : index
    %1 = vector.load %arg3[%c0_1, %c0_2] : memref<256x128xf32, #tpu.memory_space<vmem>>, vector<256x128xf32>
    %cst = arith.constant dense<0.000000e+00> : vector<128x128xf32>
    %2 = tpu.matmul %0, %1, %cst {dimension_numbers = #tpu.dot_dimension_numbers<[1], [0], [0], [1], [0, 0, 1, 1], [], []>} : vector<128x256xf32>, vector<256x128xf32>, vector<128x128xf32> -> vector<128x128xf32>
    %c0_i32 = arith.constant 0 : i32
    %3 = arith.cmpi eq, %arg1, %c0_i32 : i32
    %4 = arith.extui %3 : i1 to i32
    %c0_i32_3 = arith.constant 0 : i32
    %5 = arith.cmpi ne, %4, %c0_i32_3 : i32
    scf.if %5 {
      %c0_8 = arith.constant 0 : index
      %c0_9 = arith.constant 0 : index
      %12 = vector.load %arg4[%c0_8, %c0_9] : memref<128x128xf32, #tpu.memory_space<vmem>>, vector<128x128xf32>
      %13 = arith.addf %12, %2 : vector<128x128xf32>
      %c0_10 = arith.constant 0 : index
      %c0_11 = arith.constant 0 : index
      %14 = vector.load %arg5[%c0_10, %c0_11] : memref<128x128xf32, #tpu.memory_space<vmem>>, vector<128x128xf32>
      tpu.vector_store %arg5[%c0_10, %c0_11], %13 {strides = array<i32>} : memref<128x128xf32, #tpu.memory_space<vmem>>, vector<128x128xf32>,
    } else {
    }
    %c0_i32_4 = arith.constant 0 : i32
    %6 = arith.cmpi sgt, %arg1, %c0_i32_4 : i32
    %7 = arith.extui %6 : i1 to i32
    %c0_i32_5 = arith.constant 0 : i32
    %8 = arith.cmpi ne, %7, %c0_i32_5 : i32
    scf.if %8 {
      %c0_8 = arith.constant 0 : index
      %c0_9 = arith.constant 0 : index
      %12 = vector.load %arg5[%c0_8, %c0_9] : memref<128x128xf32, #tpu.memory_space<vmem>>, vector<128x128xf32>
      %13 = arith.addf %12, %2 : vector<128x128xf32>
      %c0_10 = arith.constant 0 : index
      %c0_11 = arith.constant 0 : index
      %14 = vector.load %arg5[%c0_10, %c0_11] : memref<128x128xf32, #tpu.memory_space<vmem>>, vector<128x128xf32>
      tpu.vector_store %arg5[%c0_10, %c0_11], %13 {strides = array<i32>} : memref<128x128xf32, #tpu.memory_space<vmem>>, vector<128x128xf32>,
    } else {
    }
    %c0_i32_6 = arith.constant 0 : i32
    %9 = arith.cmpi eq, %arg1, %c0_i32_6 : i32
    %10 = arith.extui %9 : i1 to i32
    %c0_i32_7 = arith.constant 0 : i32
    %11 = arith.cmpi ne, %10, %c0_i32_7 : i32
    scf.if %11 {
      %c0_8 = arith.constant 0 : index
      %c0_9 = arith.constant 0 : index
      %12 = vector.load %arg5[%c0_8, %c0_9] : memref<128x128xf32, #tpu.memory_space<vmem>>, vector<128x128xf32>
      %cst_10 = arith.constant 0.333333343 : f32
      %13 = vector.broadcast %cst_10 : f32 to vector<128x128xf32>
      %14 = arith.mulf %12, %13 : vector<128x128xf32>
      %c0_11 = arith.constant 0 : index
      %c0_12 = arith.constant 0 : index
      %15 = vector.load %arg5[%c0_11, %c0_12] : memref<128x128xf32, #tpu.memory_space<vmem>>, vector<128x128xf32>
      tpu.vector_store %arg5[%c0_11, %c0_12], %14 {strides = array<i32>} : memref<128x128xf32, #tpu.memory_space<vmem>>, vector<128x128xf32>,
    } else {
    }
    return
  }
  func.func @transform_0(%arg0: i32, %arg1: i32) -> (i32, i32) {
    %c0_i32 = arith.constant 0 : i32
    return %arg0, %arg1 : i32, i32
  }
  func.func @transform_1(%arg0: i32, %arg1: i32) -> (i32, i32) {
    %c0_i32 = arith.constant 0 : i32
    %c0_i32_0 = arith.constant 0 : i32
    return %arg1, %c0_i32 : i32, i32
  }
  func.func @transform_2(%arg0: i32, %arg1: i32) -> (i32, i32) {
    %c0_i32 = arith.constant 0 : i32
    %c0_i32_0 = arith.constant 0 : i32
    return %arg0, %c0_i32 : i32, i32
  }
  func.func @transform_3(%arg0: i32, %arg1: i32) -> (i32, i32) {
    %c0_i32 = arith.constant 0 : i32
    %c0_i32_0 = arith.constant 0 : i32
    return %arg0, %c0_i32 : i32, i32
  }
}

</mosaic_0001>

<llo_original>
// kernel: _lightgcn_forward.4
$region0: #{_lightgcn_forward.4}
  #allocation0 [shape = 'u32[]', space=smem, size = 0x4, offset = 0x4, fixed_abs, tag = 'smem constant byte address 0x4 - core index']
  #allocation1 [shape = 'u32[144,128]{1,0:T(1,128)}', space=vmem, size = 0x12000, scoped, tag = 'internal scratch']
  #allocation2 [shape = 'f32[128,128]{1,0:T(8,128)}', space=vmem, size = 0x10000, scoped, tag = 'scratch operand']
  %s0 = inlined_call_operand.vmem [shape: f32[128,256], index: 0, kind: input, shape index: {}]
  %s1 = inlined_call_operand.vmem [shape: f32[256,128], index: 1, kind: input, shape index: {}]
  %s2 = inlined_call_operand.vmem [shape: f32[128,128], index: 2, kind: input, shape index: {}, may-alias: {2,4}]
  %s3 = inlined_call_operand.vmem [shape: f32[128,128], index: 3, kind: output, shape index: {0}]
  %s4 = inlined_call_operand.vmem [shape: f32[128,128], index: 4, kind: output, shape index: {1}, may-alias: {2,4}]
  %5 = xla_tuple %s3, %s4
  %s6 = sld [smem:[#allocation0]]
  $region42: #{_lightgcn_forward.4} parent=0
    _
  %s8 = ssub.s32 1, %s6
  %s9 = scalar_select 0, %s8, %s6
  // Predicated region
  $region2: #{_lightgcn_forward.4} parent=0 // pred_check
    _
  $region3: #{_lightgcn_forward.4} parent=0 // pred_check_branch
    %11 = sbr.rel (0) target = $region5
  $region4: #{_lightgcn_forward.4} parent=0 // pred_region
    _
  $region5: #{_lightgcn_forward.4} parent=0 // pred_fallthru
    _
  // Predicated region
  $region6: #{_lightgcn_forward.4} parent=0 // pred_check
    _
  $region7: #{_lightgcn_forward.4} parent=0 // pred_check_branch
    %13 = sbr.rel (0) target = $region9
  $region8: #{_lightgcn_forward.4} parent=0 // pred_region
    _
  $region9: #{_lightgcn_forward.4} parent=0 // pred_fallthru
    _
  // Predicated region
  $region10: #{_lightgcn_forward.4} parent=0 // pred_check
    _
  $region11: #{_lightgcn_forward.4} parent=0 // pred_check_branch
    %15 = sbr.rel (0) target = $region13
  $region12: #{_lightgcn_forward.4} parent=0 // pred_region
    _
  $region13: #{_lightgcn_forward.4} parent=0 // pred_fallthru
    _
  %v16 = vld [vmem:[%s0] sm:$0xff]
  %v17 = vld [vmem:[%s0 + $0x8] sm:$0xff]
  %v18 = vld [vmem:[%s0 + $0x10] sm:$0xff]
  %v19 = vld [vmem:[%s0 + $0x18] sm:$0xff]
  %v20 = vld [vmem:[%s0 + $0x20] sm:$0xff]
  %v21 = vld [vmem:[%s0 + $0x28] sm:$0xff]
  %v22 = vld [vmem:[%s0 + $0x30] sm:$0xff]
  %v23 = vld [vmem:[%s0 + $0x38] sm:$0xff]
  %v24 = vld [vmem:[%s0 + $0x40] sm:$0xff]
  %v25 = vld [vmem:[%s0 + $0x48] sm:$0xff]
  %v26 = vld [vmem:[%s0 + $0x50] sm:$0xff]
  %v27 = vld [vmem:[%s0 + $0x58] sm:$0xff]
  %v28 = vld [vmem:[%s0 + $0x60] sm:$0xff]
  %v29 = vld [vmem:[%s0 + $0x68] sm:$0xff]
  %v30 = vld [vmem:[%s0 + $0x70] sm:$0xff]
  %v31 = vld [vmem:[%s0 + $0x78] sm:$0xff]
  %v32 = vld [vmem:[%s0 + $0x80] sm:$0xff]
  %v33 = vld [vmem:[%s0 + $0x88] sm:$0xff]
  %v34 = vld [vmem:[%s0 + $0x90] sm:$0xff]
  %v35 = vld [vmem:[%s0 + $0x98] sm:$0xff]
  %v36 = vld [vmem:[%s0 + $0xa0] sm:$0xff]
  %v37 = vld [vmem:[%s0 + $0xa8] sm:$0xff]
  %v38 = vld [vmem:[%s0 + $0xb0] sm:$0xff]
  %v39 = vld [vmem:[%s0 + $0xb8] sm:$0xff]
  %v40 = vld [vmem:[%s0 + $0xc0] sm:$0xff]
  %v41 = vld [vmem:[%s0 + $0xc8] sm:$0xff]
  %v42 = vld [vmem:[%s0 + $0xd0] sm:$0xff]
  %v43 = vld [vmem:[%s0 + $0xd8] sm:$0xff]
  %v44 = vld [vmem:[%s0 + $0xe0] sm:$0xff]
  %v45 = vld [vmem:[%s0 + $0xe8] sm:$0xff]
  %v46 = vld [vmem:[%s0 + $0xf0] sm:$0xff]
  %v47 = vld [vmem:[%s0 + $0xf8] sm:$0xff]
  %v48 = vld [vmem:[%s1] sm:$0xff]
  %v49 = vld [vmem:[%s1 + $0x8] sm:$0xff]
  %v50 = vld [vmem:[%s1 + $0x10] sm:$0xff]
  %v51 = vld [vmem:[%s1 + $0x18] sm:$0xff]
  %v52 = vld [vmem:[%s1 + $0x20] sm:$0xff]
  %v53 = vld [vmem:[%s1 + $0x28] sm:$0xff]
  %v54 = vld [vmem:[%s1 + $0x30] sm:$0xff]
  %v55 = vld [vmem:[%s1 + $0x38] sm:$0xff]
  %v56 = vld [vmem:[%s1 + $0x40] sm:$0xff]
  %v57 = vld [vmem:[%s1 + $0x48] sm:$0xff]
  %v58 = vld [vmem:[%s1 + $0x50] sm:$0xff]
  %v59 = vld [vmem:[%s1 + $0x58] sm:$0xff]
  %v60 = vld [vmem:[%s1 + $0x60] sm:$0xff]
  %v61 = vld [vmem:[%s1 + $0x68] sm:$0xff]
  %v62 = vld [vmem:[%s1 + $0x70] sm:$0xff]
  %v63 = vld [vmem:[%s1 + $0x78] sm:$0xff]
  %v64 = vld [vmem:[%s1 + $0x80] sm:$0xff]
  %v65 = vld [vmem:[%s1 + $0x88] sm:$0xff]
  %v66 = vld [vmem:[%s1 + $0x90] sm:$0xff]
  %v67 = vld [vmem:[%s1 + $0x98] sm:$0xff]
  %v68 = vld [vmem:[%s1 + $0xa0] sm:$0xff]
  %v69 = vld [vmem:[%s1 + $0xa8] sm:$0xff]
  %v70 = vld [vmem:[%s1 + $0xb0] sm:$0xff]
  %v71 = vld [vmem:[%s1 + $0xb8] sm:$0xff]
  %v72 = vld [vmem:[%s1 + $0xc0] sm:$0xff]
  %v73 = vld [vmem:[%s1 + $0xc8] sm:$0xff]
  %v74 = vld [vmem:[%s1 + $0xd0] sm:$0xff]
  %v75 = vld [vmem:[%s1 + $0xd8] sm:$0xff]
  %v76 = vld [vmem:[%s1 + $0xe0] sm:$0xff]
  %v77 = vld [vmem:[%s1 + $0xe8] sm:$0xff]
  %v78 = vld [vmem:[%s1 + $0xf0] sm:$0xff]
  %v79 = vld [vmem:[%s1 + $0xf8] sm:$0xff]
  %80 = vmatprep.subr.mxu0 0.0
  %81 = vmatpush1.msra.mxu0 %v48
  %82 = vmatprep.subr.mxu0 0.0
  %83 = vmatpush1.msra.mxu0 %v49
  %84 = vmatprep.subr.mxu0 0.0
  %85 = vmatpush1.msra.mxu0 %v50
  %86 = vmatprep.subr.mxu0 0.0
  %87 = vmatpush1.msra.mxu0 %v51
  %88 = vmatprep.subr.mxu0 0.0
  %89 = vmatpush1.msra.mxu0 %v52
  %90 = vmatprep.subr.mxu0 0.0
  %91 = vmatpush1.msra.mxu0 %v53
  %92 = vmatprep.subr.mxu0 0.0
  %93 = vmatpush1.msra.mxu0 %v54
  %94 = vmatprep.subr.mxu0 0.0
  %95 = vmatpush1.msra.mxu0 %v55
  %96 = vmatprep.subr.mxu0 0.0
  %97 = vmatpush1.msra.mxu0 %v56
  %98 = vmatprep.subr.mxu0 0.0
  %99 = vmatpush1.msra.mxu0 %v57
  %100 = vmatprep.subr.mxu0 0.0
  %101 = vmatpush1.msra.mxu0 %v58
  %102 = vmatprep.subr.mxu0 0.0
  %103 = vmatpush1.msra.mxu0 %v59
  %104 = vmatprep.subr.mxu0 0.0
  %105 = vmatpush1.msra.mxu0 %v60
  %106 = vmatprep.subr.mxu0 0.0
  %107 = vmatpush1.msra.mxu0 %v61
  %108 = vmatprep.subr.mxu0 0.0
  %109 = vmatpush1.msra.mxu0 %v62
  %110 = vmatprep.subr.mxu0 0.0
  %111 = vmatpush1.msra.mxu0 %v63
  %112 = vmatprep.subr.mxu0 0.0
  %113 = vmatpush1.msra.mxu0 %v64
  %114 = vmatprep.subr.mxu0 0.0
  %115 = vmatpush1.msra.mxu0 %v65
  %116 = vmatprep.subr.mxu0 0.0
  %117 = vmatpush1.msra.mxu0 %v66
  %118 = vmatprep.subr.mxu0 0.0
  %119 = vmatpush1.msra.mxu0 %v67
  %120 = vmatprep.subr.mxu0 0.0
  %121 = vmatpush1.msra.mxu0 %v68
  %122 = vmatprep.subr.mxu0 0.0
  %123 = vmatpush1.msra.mxu0 %v69
  %124 = vmatprep.subr.mxu0 0.0
  %125 = vmatpush1.msra.mxu0 %v70
  %126 = vmatprep.subr.mxu0 0.0
  %127 = vmatpush1.msra.mxu0 %v71
  %128 = vmatprep.subr.mxu0 0.0
  %129 = vmatpush1.msra.mxu0 %v72
  %130 = vmatprep.subr.mxu0 0.0
  %131 = vmatpush1.msra.mxu0 %v73
  %132 = vmatprep.subr.mxu0 0.0
  %133 = vmatpush1.msra.mxu0 %v74
  %134 = vmatprep.subr.mxu0 0.0
  %135 = vmatpush1.msra.mxu0 %v75
  %136 = vmatprep.subr.mxu0 0.0
  %137 = vmatpush1.msra.mxu0 %v76
  %138 = vmatprep.subr.mxu0 0.0
  %139 = vmatpush1.msra.mxu0 %v77
  %140 = vmatprep.subr.mxu0 0.0
  %141 = vmatpush1.msra.mxu0 %v78
  %142 = vmatprep.subr.mxu0 0.0
  %143 = vmatpush1.msra.mxu0 %v79
  %144 = vmatprep.mubr.f32.mxu0 %v17
  %145 = vmatmul.mubr.f32.gmra.mrb[0].mxu0 %v16
  %v146 = vpop.f32.mrb[0].mxu0
  %v147 = vadd.f32 0.0, %v146
  %v148 = vpop.f32.mrb[0].mxu0
  %149 = vmatprep.mubr.f32.mxu0 %v19
  %150 = vmatmul.mubr.f32.gmra.mrb[0].mxu0 %v18
  %v151 = vpop.f32.mrb[0].mxu0
  %v152 = vadd.f32 0.0, %v151
  %v153 = vpop.f32.mrb[0].mxu0
  %154 = vmatprep.mubr.f32.mxu0 %v21
  %155 = vmatmul.mubr.f32.gmra.mrb[0].mxu0 %v20
  %v156 = vpop.f32.mrb[0].mxu0
  %v157 = vadd.f32 0.0, %v156
  %v158 = vpop.f32.mrb[0].mxu0
  %159 = vmatprep.mubr.f32.mxu0 %v23
  %160 = vmatmul.mubr.f32.gmra.mrb[0].mxu0 %v22
  %v161 = vpop.f32.mrb[0].mxu0
  %v162 = vadd.f32 0.0, %v161
  %v163 = vpop.f32.mrb[0].mxu0
  %164 = vmatprep.mubr.f32.mxu0 %v25
  %165 = vmatmul.mubr.f32.gmra.mrb[0].mxu0 %v24
  %v166 = vpop.f32.mrb[0].mxu0
  %v167 = vadd.f32 0.0, %v166
  %v168 = vpop.f32.mrb[0].mxu0
  %169 = vmatprep.mubr.f32.mxu0 %v27
  %170 = vmatmul.mubr.f32.gmra.mrb[0].mxu0 %v26
  %v171 = vpop.f32.mrb[0].mxu0
  %v172 = vadd.f32 0.0, %v171
  %v173 = vpop.f32.mrb[0].mxu0
  %174 = vmatprep.mubr.f32.mxu0 %v29
  %175 = vmatmul.mubr.f32.gmra.mrb[0].mxu0 %v28
  %v176 = vpop.f32.mrb[0].mxu0
  %v177 = vadd.f32 0.0, %v176
  %v178 = vpop.f32.mrb[0].mxu0
  %179 = vmatprep.mubr.f32.mxu0 %v31
  %180 = vmatmul.mubr.f32.gmra.mrb[0].mxu0 %v30
  %v181 = vpop.f32.mrb[0].mxu0
  %v182 = vadd.f32 0.0, %v181
  %v183 = vpop.f32.mrb[0].mxu0
  %184 = vmatprep.mubr.f32.mxu0 %v33
  %185 = vmatmul.mubr.f32.gmra.mrb[0].mxu0 %v32
  %v186 = vpop.f32.mrb[0].mxu0
  %v187 = vadd.f32 0.0, %v186
  %v188 = vpop.f32.mrb[0].mxu0
  %189 = vmatprep.mubr.f32.mxu0 %v35
  %190 = vmatmul.mubr.f32.gmra.mrb[0].mxu0 %v34
  %v191 = vpop.f32.mrb[0].mxu0
  %v192 = vadd.f32 0.0, %v191
  %v193 = vpop.f32.mrb[0].mxu0
  %194 = vmatprep.mubr.f32.mxu0 %v37
  %195 = vmatmul.mubr.f32.gmra.mrb[0].mxu0 %v36
  %v196 = vpop.f32.mrb[0].mxu0
  %v197 = vadd.f32 0.0, %v196
  %v198 = vpop.f32.mrb[0].mxu0
  %199 = vmatprep.mubr.f32.mxu0 %v39
  %200 = vmatmul.mubr.f32.gmra.mrb[0].mxu0 %v38
  %v201 = vpop.f32.mrb[0].mxu0
  %v202 = vadd.f32 0.0, %v201
  %v203 = vpop.f32.mrb[0].mxu0
  %204 = vmatprep.mubr.f32.mxu0 %v41
  %205 = vmatmul.mubr.f32.gmra.mrb[0].mxu0 %v40
  %v206 = vpop.f32.mrb[0].mxu0
  %v207 = vadd.f32 0.0, %v206
  %v208 = vpop.f32.mrb[0].mxu0
  %209 = vmatprep.mubr.f32.mxu0 %v43
  %210 = vmatmul.mubr.f32.gmra.mrb[0].mxu0 %v42
  %v211 = vpop.f32.mrb[0].mxu0
  %v212 = vadd.f32 0.0, %v211
  %v213 = vpop.f32.mrb[0].mxu0
  %214 = vmatprep.mubr.f32.mxu0 %v45
  %215 = vmatmul.mubr.f32.gmra.mrb[0].mxu0 %v44
  %v216 = vpop.f32.mrb[0].mxu0
  %v217 = vadd.f32 0.0, %v216
  %v218 = vpop.f32.mrb[0].mxu0
  %219 = vmatprep.mubr.f32.mxu0 %v47
  %220 = vmatmul.mubr.f32.gmra.mrb[0].mxu0 %v46
  %v221 = vpop.f32.mrb[0].mxu0
  %v222 = vadd.f32 0.0, %v221
  %v223 = vpop.f32.mrb[0].mxu0
  %224 = vdwg.mxu0
  %p225 = scmp.eq.s32.totalorder 0, 0
  // Predicated region
  $region14: #{_lightgcn_forward.4} parent=0 // pred_check
    %p226 = pneg %p225
  $region15: #{_lightgcn_forward.4} parent=0 // pred_check_branch
    %228 = sbr.rel (%p226) target = $region17
  $region16: #{_lightgcn_forward.4} parent=0 // pred_region
    %229 = vst [vmem:[#allocation2] sm:$0xff] %v147
    %230 = vst [vmem:[#allocation2 + $0x8] sm:$0xff] %v152
    %231 = vst [vmem:[#allocation2 + $0x10] sm:$0xff] %v157
    %232 = vst [vmem:[#allocation2 + $0x18] sm:$0xff] %v162
    %233 = vst [vmem:[#allocation2 + $0x20] sm:$0xff] %v167
    %234 = vst [vmem:[#allocation2 + $0x28] sm:$0xff] %v172
    %235 = vst [vmem:[#allocation2 + $0x30] sm:$0xff] %v177
    %236 = vst [vmem:[#allocation2 + $0x38] sm:$0xff] %v182
    %237 = vst [vmem:[#allocation2 + $0x40] sm:$0xff] %v187
    %238 = vst [vmem:[#allocation2 + $0x48] sm:$0xff] %v192
    %239 = vst [vmem:[#allocation2 + $0x50] sm:$0xff] %v197
    %240 = vst [vmem:[#allocation2 + $0x58] sm:$0xff] %v202
    %241 = vst [vmem:[#allocation2 + $0x60] sm:$0xff] %v207
    %242 = vst [vmem:[#allocation2 + $0x68] sm:$0xff] %v212
    %243 = vst [vmem:[#allocation2 + $0x70] sm:$0xff] %v217
    %244 = vst [vmem:[#allocation2 + $0x78] sm:$0xff] %v222
  $region17: #{_lightgcn_forward.4} parent=0 // pred_fallthru
    _
  %p245 = scmp.gt.s32.totalorder 0, 0
  // Predicated region
  $region18: #{_lightgcn_forward.4} parent=0 // pred_check
    %p246 = pneg %p245
  $region19: #{_lightgcn_forward.4} parent=0 // pred_check_branch
    %248 = sbr.rel (%p246) target = $region21
  $region20: #{_lightgcn_forward.4} parent=0 // pred_region
    %v249 = vld [vmem:[#allocation2] sm:$0xff]
    %v250 = vld [vmem:[#allocation2 + $0x8] sm:$0xff]
    %v251 = vld [vmem:[#allocation2 + $0x10] sm:$0xff]
    %v252 = vld [vmem:[#allocation2 + $0x18] sm:$0xff]
    %v253 = vld [vmem:[#allocation2 + $0x20] sm:$0xff]
    %v254 = vld [vmem:[#allocation2 + $0x28] sm:$0xff]
    %v255 = vld [vmem:[#allocation2 + $0x30] sm:$0xff]
    %v256 = vld [vmem:[#allocation2 + $0x38] sm:$0xff]
    %v257 = vld [vmem:[#allocation2 + $0x40] sm:$0xff]
    %v258 = vld [vmem:[#allocation2 + $0x48] sm:$0xff]
    %v259 = vld [vmem:[#allocation2 + $0x50] sm:$0xff]
    %v260 = vld [vmem:[#allocation2 + $0x58] sm:$0xff]
    %v261 = vld [vmem:[#allocation2 + $0x60] sm:$0xff]
    %v262 = vld [vmem:[#allocation2 + $0x68] sm:$0xff]
    %v263 = vld [vmem:[#allocation2 + $0x70] sm:$0xff]
    %v264 = vld [vmem:[#allocation2 + $0x78] sm:$0xff]
    %v265 = vadd.f32 %v249, %v147
    %v266 = vadd.f32 %v250, %v152
    %v267 = vadd.f32 %v251, %v157
    %v268 = vadd.f32 %v252, %v162
    %v269 = vadd.f32 %v253, %v167
    %v270 = vadd.f32 %v254, %v172
    %v271 = vadd.f32 %v255, %v177
    %v272 = vadd.f32 %v256, %v182
    %v273 = vadd.f32 %v257, %v187
    %v274 = vadd.f32 %v258, %v192
    %v275 = vadd.f32 %v259, %v197
    %v276 = vadd.f32 %v260, %v202
    %v277 = vadd.f32 %v261, %v207
    %v278 = vadd.f32 %v262, %v212
    %v279 = vadd.f32 %v263, %v217
    %v280 = vadd.f32 %v264, %v222
    %281 = vst [vmem:[#allocation2] sm:$0xff] %v265
    %282 = vst [vmem:[#allocation2 + $0x8] sm:$0xff] %v266
    %283 = vst [vmem:[#allocation2 + $0x10] sm:$0xff] %v267
    %284 = vst [vmem:[#allocation2 + $0x18] sm:$0xff] %v268
    %285 = vst [vmem:[#allocation2 + $0x20] sm:$0xff] %v269
    %286 = vst [vmem:[#allocation2 + $0x28] sm:$0xff] %v270
    %287 = vst [vmem:[#allocation2 + $0x30] sm:$0xff] %v271
    %288 = vst [vmem:[#allocation2 + $0x38] sm:$0xff] %v272
    %289 = vst [vmem:[#allocation2 + $0x40] sm:$0xff] %v273
    %290 = vst [vmem:[#allocation2 + $0x48] sm:$0xff] %v274
    %291 = vst [vmem:[#allocation2 + $0x50] sm:$0xff] %v275
    %292 = vst [vmem:[#allocation2 + $0x58] sm:$0xff] %v276
    %293 = vst [vmem:[#allocation2 + $0x60] sm:$0xff] %v277
    %294 = vst [vmem:[#allocation2 + $0x68] sm:$0xff] %v278
    %295 = vst [vmem:[#allocation2 + $0x70] sm:$0xff] %v279
    %296 = vst [vmem:[#allocation2 + $0x78] sm:$0xff] %v280
  $region21: #{_lightgcn_forward.4} parent=0 // pred_fallthru
    _
  // Predicated region
  $region22: #{_lightgcn_forward.4} parent=0 // pred_check
    %p297 = pneg %p225
  $region23: #{_lightgcn_forward.4} parent=0 // pred_check_branch
    %299 = sbr.rel (%p297) target = $region25
  $region24: #{_lightgcn_forward.4} parent=0 // pred_region
    %v300 = vld [vmem:[#allocation2] sm:$0xff]
    %v301 = vld [vmem:[#allocation2 + $0x8] sm:$0xff]
    %v302 = vld [vmem:[#allocation2 + $0x10] sm:$0xff]
    %v303 = vld [vmem:[#allocation2 + $0x18] sm:$0xff]
    %v304 = vld [vmem:[#allocation2 + $0x20] sm:$0xff]
    %v305 = vld [vmem:[#allocation2 + $0x28] sm:$0xff]
    %v306 = vld [vmem:[#allocation2 + $0x30] sm:$0xff]
    %v307 = vld [vmem:[#allocation2 + $0x38] sm:$0xff]
    %v308 = vld [vmem:[#allocation2 + $0x40] sm:$0xff]
    %v309 = vld [vmem:[#allocation2 + $0x48] sm:$0xff]
    %v310 = vld [vmem:[#allocation2 + $0x50] sm:$0xff]
    %v311 = vld [vmem:[#allocation2 + $0x58] sm:$0xff]
    %v312 = vld [vmem:[#allocation2 + $0x60] sm:$0xff]
    %v313 = vld [vmem:[#allocation2 + $0x68] sm:$0xff]
    %v314 = vld [vmem:[#allocation2 + $0x70] sm:$0xff]
    %v315 = vld [vmem:[#allocation2 + $0x78] sm:$0xff]
    %316 = vst [vmem:[%s3] sm:$0xff] %v300
    %317 = vst [vmem:[%s3 + $0x8] sm:$0xff] %v301
    %318 = vst [vmem:[%s3 + $0x10] sm:$0xff] %v302
    %319 = vst [vmem:[%s3 + $0x18] sm:$0xff] %v303
    %320 = vst [vmem:[%s3 + $0x20] sm:$0xff] %v304
    %321 = vst [vmem:[%s3 + $0x28] sm:$0xff] %v305
    %322 = vst [vmem:[%s3 + $0x30] sm:$0xff] %v306
    %323 = vst [vmem:[%s3 + $0x38] sm:$0xff] %v307
    %324 = vst [vmem:[%s3 + $0x40] sm:$0xff] %v308
    %325 = vst [vmem:[%s3 + $0x48] sm:$0xff] %v309
    %326 = vst [vmem:[%s3 + $0x50] sm:$0xff] %v310
    %327 = vst [vmem:[%s3 + $0x58] sm:$0xff] %v311
    %328 = vst [vmem:[%s3 + $0x60] sm:$0xff] %v312
    %329 = vst [vmem:[%s3 + $0x68] sm:$0xff] %v313
    %330 = vst [vmem:[%s3 + $0x70] sm:$0xff] %v314
    %331 = vst [vmem:[%s3 + $0x78] sm:$0xff] %v315
    %v332 = vld [vmem:[%s2] sm:$0xff]
    %v333 = vld [vmem:[%s2 + $0x8] sm:$0xff]
    %v334 = vld [vmem:[%s2 + $0x10] sm:$0xff]
    %v335 = vld [vmem:[%s2 + $0x18] sm:$0xff]
    %v336 = vld [vmem:[%s2 + $0x20] sm:$0xff]
    %v337 = vld [vmem:[%s2 + $0x28] sm:$0xff]
    %v338 = vld [vmem:[%s2 + $0x30] sm:$0xff]
    %v339 = vld [vmem:[%s2 + $0x38] sm:$0xff]
    %v340 = vld [vmem:[%s2 + $0x40] sm:$0xff]
    %v341 = vld [vmem:[%s2 + $0x48] sm:$0xff]
    %v342 = vld [vmem:[%s2 + $0x50] sm:$0xff]
    %v343 = vld [vmem:[%s2 + $0x58] sm:$0xff]
    %v344 = vld [vmem:[%s2 + $0x60] sm:$0xff]
    %v345 = vld [vmem:[%s2 + $0x68] sm:$0xff]
    %v346 = vld [vmem:[%s2 + $0x70] sm:$0xff]
    %v347 = vld [vmem:[%s2 + $0x78] sm:$0xff]
    %v348 = vld [vmem:[#allocation2] sm:$0xff]
    %v349 = vld [vmem:[#allocation2 + $0x8] sm:$0xff]
    %v350 = vld [vmem:[#allocation2 + $0x10] sm:$0xff]
    %v351 = vld [vmem:[#allocation2 + $0x18] sm:$0xff]
    %v352 = vld [vmem:[#allocation2 + $0x20] sm:$0xff]
    %v353 = vld [vmem:[#allocation2 + $0x28] sm:$0xff]
    %v354 = vld [vmem:[#allocation2 + $0x30] sm:$0xff]
    %v355 = vld [vmem:[#allocation2 + $0x38] sm:$0xff]
    %v356 = vld [vmem:[#allocation2 + $0x40] sm:$0xff]
    %v357 = vld [vmem:[#allocation2 + $0x48] sm:$0xff]
    %v358 = vld [vmem:[#allocation2 + $0x50] sm:$0xff]
    %v359 = vld [vmem:[#allocation2 + $0x58] sm:$0xff]
    %v360 = vld [vmem:[#allocation2 + $0x60] sm:$0xff]
    %v361 = vld [vmem:[#allocation2 + $0x68] sm:$0xff]
    %v362 = vld [vmem:[#allocation2 + $0x70] sm:$0xff]
    %v363 = vld [vmem:[#allocation2 + $0x78] sm:$0xff]
    %v364 = vadd.f32 %v332, %v348
    %v365 = vadd.f32 %v333, %v349
    %v366 = vadd.f32 %v334, %v350
    %v367 = vadd.f32 %v335, %v351
    %v368 = vadd.f32 %v336, %v352
    %v369 = vadd.f32 %v337, %v353
    %v370 = vadd.f32 %v338, %v354
    %v371 = vadd.f32 %v339, %v355
    %v372 = vadd.f32 %v340, %v356
    %v373 = vadd.f32 %v341, %v357
    %v374 = vadd.f32 %v342, %v358
    %v375 = vadd.f32 %v343, %v359
    %v376 = vadd.f32 %v344, %v360
    %v377 = vadd.f32 %v345, %v361
    %v378 = vadd.f32 %v346, %v362
    %v379 = vadd.f32 %v347, %v363
    %380 = vst [vmem:[%s4] sm:$0xff] %v364
    %381 = vst [vmem:[%s4 + $0x8] sm:$0xff] %v365
    %382 = vst [vmem:[%s4 + $0x10] sm:$0xff] %v366
    %383 = vst [vmem:[%s4 + $0x18] sm:$0xff] %v367
    %384 = vst [vmem:[%s4 + $0x20] sm:$0xff] %v368
    %385 = vst [vmem:[%s4 + $0x28] sm:$0xff] %v369
    %386 = vst [vmem:[%s4 + $0x30] sm:$0xff] %v370
    %387 = vst [vmem:[%s4 + $0x38] sm:$0xff] %v371
    %388 = vst [vmem:[%s4 + $0x40] sm:$0xff] %v372
    %389 = vst [vmem:[%s4 + $0x48] sm:$0xff] %v373
    %390 = vst [vmem:[%s4 + $0x50] sm:$0xff] %v374
    %391 = vst [vmem:[%s4 + $0x58] sm:$0xff] %v375
    %392 = vst [vmem:[%s4 + $0x60] sm:$0xff] %v376
    %393 = vst [vmem:[%s4 + $0x68] sm:$0xff] %v377
    %394 = vst [vmem:[%s4 + $0x70] sm:$0xff] %v378
    %395 = vst [vmem:[%s4 + $0x78] sm:$0xff] %v379
  $region25: #{_lightgcn_forward.4} parent=0 // pred_fallthru
    _
  // Predicated region
  $region26: #{_lightgcn_forward.4} parent=0 // pred_check
    _
  $region27: #{_lightgcn_forward.4} parent=0 // pred_check_branch
    %397 = sbr.rel (0) target = $region29
  $region28: #{_lightgcn_forward.4} parent=0 // pred_region
    _
  $region29: #{_lightgcn_forward.4} parent=0 // pred_fallthru
    _
  // Predicated region
  $region30: #{_lightgcn_forward.4} parent=0 // pred_check
    _
  $region31: #{_lightgcn_forward.4} parent=0 // pred_check_branch
    %399 = sbr.rel (0) target = $region33
  $region32: #{_lightgcn_forward.4} parent=0 // pred_region
    _
  $region33: #{_lightgcn_forward.4} parent=0 // pred_fallthru
    _
  // Predicated region
  $region34: #{_lightgcn_forward.4} parent=0 // pred_check
    _
  $region35: #{_lightgcn_forward.4} parent=0 // pred_check_branch
    %401 = sbr.rel (0) target = $region37
  $region36: #{_lightgcn_forward.4} parent=0 // pred_region
    _
  $region37: #{_lightgcn_forward.4} parent=0 // pred_fallthru
    _
  // Predicated region
  $region38: #{_lightgcn_forward.4} parent=0 // pred_check
    _
  $region39: #{_lightgcn_forward.4} parent=0 // pred_check_branch
    %403 = sbr.rel (0) target = $region41
  $region40: #{_lightgcn_forward.4} parent=0 // pred_region
    _
  $region41: #{_lightgcn_forward.4} parent=0 // pred_fallthru
    _

// kernel: _lightgcn_forward.7
$region0: #{_lightgcn_forward.7}
  #allocation0 [shape = 'u32[]', space=smem, size = 0x4, offset = 0x4, fixed_abs, tag = 'smem constant byte address 0x4 - core index']
  #allocation1 [shape = 'u32[144,128]{1,0:T(1,128)}', space=vmem, size = 0x12000, scoped, tag = 'internal scratch']
  %s0 = inlined_call_operand.vmem [shape: f32[256,128], index: 0, kind: input, shape index: {}]
  %s1 = inlined_call_operand.vmem [shape: f32[128,128], index: 1, kind: input, shape index: {}]
  %s2 = inlined_call_operand.vmem [shape: f32[256,128], index: 2, kind: input, shape index: {}, may-alias: {2,3}]
  %s3 = inlined_call_operand.vmem [shape: f32[256,128], index: 3, kind: output, shape index: {}, may-alias: {2,3}]
  %s4 = sld [smem:[#allocation0]]
  $region34: #{_lightgcn_forward.7} parent=0
    _
  %s6 = ssub.s32 1, %s4
  %s7 = scalar_select 0, %s6, %s4
  // Predicated region
  $region2: #{_lightgcn_forward.7} parent=0 // pred_check
    _
  $region3: #{_lightgcn_forward.7} parent=0 // pred_check_branch
    %9 = sbr.rel (0) target = $region5
  $region4: #{_lightgcn_forward.7} parent=0 // pred_region
    _
  $region5: #{_lightgcn_forward.7} parent=0 // pred_fallthru
    _
  // Predicated region
  $region6: #{_lightgcn_forward.7} parent=0 // pred_check
    _
  $region7: #{_lightgcn_forward.7} parent=0 // pred_check_branch
    %11 = sbr.rel (0) target = $region9
  $region8: #{_lightgcn_forward.7} parent=0 // pred_region
    _
  $region9: #{_lightgcn_forward.7} parent=0 // pred_fallthru
    _
  // Predicated region
  $region10: #{_lightgcn_forward.7} parent=0 // pred_check
    _
  $region11: #{_lightgcn_forward.7} parent=0 // pred_check_branch
    %13 = sbr.rel (0) target = $region13
  $region12: #{_lightgcn_forward.7} parent=0 // pred_region
    _
  $region13: #{_lightgcn_forward.7} parent=0 // pred_fallthru
    _
  %v14 = vld [vmem:[%s0] sm:$0xff]
  %v15 = vld [vmem:[%s0 + $0x8] sm:$0xff]
  %v16 = vld [vmem:[%s0 + $0x10] sm:$0xff]
  %v17 = vld [vmem:[%s0 + $0x18] sm:$0xff]
  %v18 = vld [vmem:[%s0 + $0x20] sm:$0xff]
  %v19 = vld [vmem:[%s0 + $0x28] sm:$0xff]
  %v20 = vld [vmem:[%s0 + $0x30] sm:$0xff]
  %v21 = vld [vmem:[%s0 + $0x38] sm:$0xff]
  %v22 = vld [vmem:[%s0 + $0x40] sm:$0xff]
  %v23 = vld [vmem:[%s0 + $0x48] sm:$0xff]
  %v24 = vld [vmem:[%s0 + $0x50] sm:$0xff]
  %v25 = vld [vmem:[%s0 + $0x58] sm:$0xff]
  %v26 = vld [vmem:[%s0 + $0x60] sm:$0xff]
  %v27 = vld [vmem:[%s0 + $0x68] sm:$0xff]
  %v28 = vld [vmem:[%s0 + $0x70] sm:$0xff]
  %v29 = vld [vmem:[%s0 + $0x78] sm:$0xff]
  %v30 = vld [vmem:[%s0 + $0x80] sm:$0xff]
  %v31 = vld [vmem:[%s0 + $0x88] sm:$0xff]
  %v32 = vld [vmem:[%s0 + $0x90] sm:$0xff]
  %v33 = vld [vmem:[%s0 + $0x98] sm:$0xff]
  %v34 = vld [vmem:[%s0 + $0xa0] sm:$0xff]
  %v35 = vld [vmem:[%s0 + $0xa8] sm:$0xff]
  %v36 = vld [vmem:[%s0 + $0xb0] sm:$0xff]
  %v37 = vld [vmem:[%s0 + $0xb8] sm:$0xff]
  %v38 = vld [vmem:[%s0 + $0xc0] sm:$0xff]
  %v39 = vld [vmem:[%s0 + $0xc8] sm:$0xff]
  %v40 = vld [vmem:[%s0 + $0xd0] sm:$0xff]
  %v41 = vld [vmem:[%s0 + $0xd8] sm:$0xff]
  %v42 = vld [vmem:[%s0 + $0xe0] sm:$0xff]
  %v43 = vld [vmem:[%s0 + $0xe8] sm:$0xff]
  %v44 = vld [vmem:[%s0 + $0xf0] sm:$0xff]
  %v45 = vld [vmem:[%s0 + $0xf8] sm:$0xff]
  %v46 = vld [vmem:[%s1] sm:$0xff]
  %v47 = vld [vmem:[%s1 + $0x8] sm:$0xff]
  %v48 = vld [vmem:[%s1 + $0x10] sm:$0xff]
  %v49 = vld [vmem:[%s1 + $0x18] sm:$0xff]
  %v50 = vld [vmem:[%s1 + $0x20] sm:$0xff]
  %v51 = vld [vmem:[%s1 + $0x28] sm:$0xff]
  %v52 = vld [vmem:[%s1 + $0x30] sm:$0xff]
  %v53 = vld [vmem:[%s1 + $0x38] sm:$0xff]
  %v54 = vld [vmem:[%s1 + $0x40] sm:$0xff]
  %v55 = vld [vmem:[%s1 + $0x48] sm:$0xff]
  %v56 = vld [vmem:[%s1 + $0x50] sm:$0xff]
  %v57 = vld [vmem:[%s1 + $0x58] sm:$0xff]
  %v58 = vld [vmem:[%s1 + $0x60] sm:$0xff]
  %v59 = vld [vmem:[%s1 + $0x68] sm:$0xff]
  %v60 = vld [vmem:[%s1 + $0x70] sm:$0xff]
  %v61 = vld [vmem:[%s1 + $0x78] sm:$0xff]
  %62 = vmatprep.subr.mxu0 0.0
  %63 = vmatpush1.msra.mxu0 %v46
  %64 = vmatprep.subr.mxu0 0.0
  %65 = vmatpush1.msra.mxu0 %v47
  %66 = vmatprep.subr.mxu0 0.0
  %67 = vmatpush1.msra.mxu0 %v48
  %68 = vmatprep.subr.mxu0 0.0
  %69 = vmatpush1.msra.mxu0 %v49
  %70 = vmatprep.subr.mxu0 0.0
  %71 = vmatpush1.msra.mxu0 %v50
  %72 = vmatprep.subr.mxu0 0.0
  %73 = vmatpush1.msra.mxu0 %v51
  %74 = vmatprep.subr.mxu0 0.0
  %75 = vmatpush1.msra.mxu0 %v52
  %76 = vmatprep.subr.mxu0 0.0
  %77 = vmatpush1.msra.mxu0 %v53
  %78 = vmatprep.subr.mxu0 0.0
  %79 = vmatpush1.msra.mxu0 %v54
  %80 = vmatprep.subr.mxu0 0.0
  %81 = vmatpush1.msra.mxu0 %v55
  %82 = vmatprep.subr.mxu0 0.0
  %83 = vmatpush1.msra.mxu0 %v56
  %84 = vmatprep.subr.mxu0 0.0
  %85 = vmatpush1.msra.mxu0 %v57
  %86 = vmatprep.subr.mxu0 0.0
  %87 = vmatpush1.msra.mxu0 %v58
  %88 = vmatprep.subr.mxu0 0.0
  %89 = vmatpush1.msra.mxu0 %v59
  %90 = vmatprep.subr.mxu0 0.0
  %91 = vmatpush1.msra.mxu0 %v60
  %92 = vmatprep.subr.mxu0 0.0
  %93 = vmatpush1.msra.mxu0 %v61
  %94 = vmatprep.subr.mxu0 0.0
  %95 = vmatpush1.msra.mxu0 0.0
  %96 = vmatprep.subr.mxu0 0.0
  %97 = vmatpush1.msra.mxu0 0.0
  %98 = vmatprep.subr.mxu0 0.0
  %99 = vmatpush1.msra.mxu0 0.0
  %100 = vmatprep.subr.mxu0 0.0
  %101 = vmatpush1.msra.mxu0 0.0
  %102 = vmatprep.subr.mxu0 0.0
  %103 = vmatpush1.msra.mxu0 0.0
  %104 = vmatprep.subr.mxu0 0.0
  %105 = vmatpush1.msra.mxu0 0.0
  %106 = vmatprep.subr.mxu0 0.0
  %107 = vmatpush1.msra.mxu0 0.0
  %108 = vmatprep.subr.mxu0 0.0
  %109 = vmatpush1.msra.mxu0 0.0
  %110 = vmatprep.subr.mxu0 0.0
  %111 = vmatpush1.msra.mxu0 0.0
  %112 = vmatprep.subr.mxu0 0.0
  %113 = vmatpush1.msra.mxu0 0.0
  %114 = vmatprep.subr.mxu0 0.0
  %115 = vmatpush1.msra.mxu0 0.0
  %116 = vmatprep.subr.mxu0 0.0
  %117 = vmatpush1.msra.mxu0 0.0
  %118 = vmatprep.subr.mxu0 0.0
  %119 = vmatpush1.msra.mxu0 0.0
  %120 = vmatprep.subr.mxu0 0.0
  %121 = vmatpush1.msra.mxu0 0.0
  %122 = vmatprep.subr.mxu0 0.0
  %123 = vmatpush1.msra.mxu0 0.0
  %124 = vmatprep.subr.mxu0 0.0
  %125 = vmatpush1.msra.mxu0 0.0
  %126 = vmatprep.mubr.f32.mxu0 0.0
  %127 = vmatmul.mubr.f32.gmra.mrb[0].mxu0 %v14
  %v128 = vpop.f32.mrb[0].mxu0
  %v129 = vadd.f32 0.0, %v128
  %v130 = vpop.f32.mrb[0].mxu0
  %131 = vmatprep.mubr.f32.mxu0 0.0
  %132 = vmatmul.mubr.f32.gmra.mrb[0].mxu0 %v15
  %v133 = vpop.f32.mrb[0].mxu0
  %v134 = vadd.f32 0.0, %v133
  %v135 = vpop.f32.mrb[0].mxu0
  %136 = vmatprep.mubr.f32.mxu0 0.0
  %137 = vmatmul.mubr.f32.gmra.mrb[0].mxu0 %v16
  %v138 = vpop.f32.mrb[0].mxu0
  %v139 = vadd.f32 0.0, %v138
  %v140 = vpop.f32.mrb[0].mxu0
  %141 = vmatprep.mubr.f32.mxu0 0.0
  %142 = vmatmul.mubr.f32.gmra.mrb[0].mxu0 %v17
  %v143 = vpop.f32.mrb[0].mxu0
  %v144 = vadd.f32 0.0, %v143
  %v145 = vpop.f32.mrb[0].mxu0
  %146 = vmatprep.mubr.f32.mxu0 0.0
  %147 = vmatmul.mubr.f32.gmra.mrb[0].mxu0 %v18
  %v148 = vpop.f32.mrb[0].mxu0
  %v149 = vadd.f32 0.0, %v148
  %v150 = vpop.f32.mrb[0].mxu0
  %151 = vmatprep.mubr.f32.mxu0 0.0
  %152 = vmatmul.mubr.f32.gmra.mrb[0].mxu0 %v19
  %v153 = vpop.f32.mrb[0].mxu0
  %v154 = vadd.f32 0.0, %v153
  %v155 = vpop.f32.mrb[0].mxu0
  %156 = vmatprep.mubr.f32.mxu0 0.0
  %157 = vmatmul.mubr.f32.gmra.mrb[0].mxu0 %v20
  %v158 = vpop.f32.mrb[0].mxu0
  %v159 = vadd.f32 0.0, %v158
  %v160 = vpop.f32.mrb[0].mxu0
  %161 = vmatprep.mubr.f32.mxu0 0.0
  %162 = vmatmul.mubr.f32.gmra.mrb[0].mxu0 %v21
  %v163 = vpop.f32.mrb[0].mxu0
  %v164 = vadd.f32 0.0, %v163
  %v165 = vpop.f32.mrb[0].mxu0
  %166 = vmatprep.mubr.f32.mxu0 0.0
  %167 = vmatmul.mubr.f32.gmra.mrb[0].mxu0 %v22
  %v168 = vpop.f32.mrb[0].mxu0
  %v169 = vadd.f32 0.0, %v168
  %v170 = vpop.f32.mrb[0].mxu0
  %171 = vmatprep.mubr.f32.mxu0 0.0
  %172 = vmatmul.mubr.f32.gmra.mrb[0].mxu0 %v23
  %v173 = vpop.f32.mrb[0].mxu0
  %v174 = vadd.f32 0.0, %v173
  %v175 = vpop.f32.mrb[0].mxu0
  %176 = vmatprep.mubr.f32.mxu0 0.0
  %177 = vmatmul.mubr.f32.gmra.mrb[0].mxu0 %v24
  %v178 = vpop.f32.mrb[0].mxu0
  %v179 = vadd.f32 0.0, %v178
  %v180 = vpop.f32.mrb[0].mxu0
  %181 = vmatprep.mubr.f32.mxu0 0.0
  %182 = vmatmul.mubr.f32.gmra.mrb[0].mxu0 %v25
  %v183 = vpop.f32.mrb[0].mxu0
  %v184 = vadd.f32 0.0, %v183
  %v185 = vpop.f32.mrb[0].mxu0
  %186 = vmatprep.mubr.f32.mxu0 0.0
  %187 = vmatmul.mubr.f32.gmra.mrb[0].mxu0 %v26
  %v188 = vpop.f32.mrb[0].mxu0
  %v189 = vadd.f32 0.0, %v188
  %v190 = vpop.f32.mrb[0].mxu0
  %191 = vmatprep.mubr.f32.mxu0 0.0
  %192 = vmatmul.mubr.f32.gmra.mrb[0].mxu0 %v27
  %v193 = vpop.f32.mrb[0].mxu0
  %v194 = vadd.f32 0.0, %v193
  %v195 = vpop.f32.mrb[0].mxu0
  %196 = vmatprep.mubr.f32.mxu0 0.0
  %197 = vmatmul.mubr.f32.gmra.mrb[0].mxu0 %v28
  %v198 = vpop.f32.mrb[0].mxu0
  %v199 = vadd.f32 0.0, %v198
  %v200 = vpop.f32.mrb[0].mxu0
  %201 = vmatprep.mubr.f32.mxu0 0.0
  %202 = vmatmul.mubr.f32.gmra.mrb[0].mxu0 %v29
  %v203 = vpop.f32.mrb[0].mxu0
  %v204 = vadd.f32 0.0, %v203
  %v205 = vpop.f32.mrb[0].mxu0
  %206 = vmatprep.mubr.f32.mxu0 0.0
  %207 = vmatmul.mubr.f32.gmra.mrb[0].mxu0 %v30
  %v208 = vpop.f32.mrb[0].mxu0
  %v209 = vadd.f32 0.0, %v208
  %v210 = vpop.f32.mrb[0].mxu0
  %211 = vmatprep.mubr.f32.mxu0 0.0
  %212 = vmatmul.mubr.f32.gmra.mrb[0].mxu0 %v31
  %v213 = vpop.f32.mrb[0].mxu0
  %v214 = vadd.f32 0.0, %v213
  %v215 = vpop.f32.mrb[0].mxu0
  %216 = vmatprep.mubr.f32.mxu0 0.0
  %217 = vmatmul.mubr.f32.gmra.mrb[0].mxu0 %v32
  %v218 = vpop.f32.mrb[0].mxu0
  %v219 = vadd.f32 0.0, %v218
  %v220 = vpop.f32.mrb[0].mxu0
  %221 = vmatprep.mubr.f32.mxu0 0.0
  %222 = vmatmul.mubr.f32.gmra.mrb[0].mxu0 %v33
  %v223 = vpop.f32.mrb[0].mxu0
  %v224 = vadd.f32 0.0, %v223
  %v225 = vpop.f32.mrb[0].mxu0
  %226 = vmatprep.mubr.f32.mxu0 0.0
  %227 = vmatmul.mubr.f32.gmra.mrb[0].mxu0 %v34
  %v228 = vpop.f32.mrb[0].mxu0
  %v229 = vadd.f32 0.0, %v228
  %v230 = vpop.f32.mrb[0].mxu0
  %231 = vmatprep.mubr.f32.mxu0 0.0
  %232 = vmatmul.mubr.f32.gmra.mrb[0].mxu0 %v35
  %v233 = vpop.f32.mrb[0].mxu0
  %v234 = vadd.f32 0.0, %v233
  %v235 = vpop.f32.mrb[0].mxu0
  %236 = vmatprep.mubr.f32.mxu0 0.0
  %237 = vmatmul.mubr.f32.gmra.mrb[0].mxu0 %v36
  %v238 = vpop.f32.mrb[0].mxu0
  %v239 = vadd.f32 0.0, %v238
  %v240 = vpop.f32.mrb[0].mxu0
  %241 = vmatprep.mubr.f32.mxu0 0.0
  %242 = vmatmul.mubr.f32.gmra.mrb[0].mxu0 %v37
  %v243 = vpop.f32.mrb[0].mxu0
  %v244 = vadd.f32 0.0, %v243
  %v245 = vpop.f32.mrb[0].mxu0
  %246 = vmatprep.mubr.f32.mxu0 0.0
  %247 = vmatmul.mubr.f32.gmra.mrb[0].mxu0 %v38
  %v248 = vpop.f32.mrb[0].mxu0
  %v249 = vadd.f32 0.0, %v248
  %v250 = vpop.f32.mrb[0].mxu0
  %251 = vmatprep.mubr.f32.mxu0 0.0
  %252 = vmatmul.mubr.f32.gmra.mrb[0].mxu0 %v39
  %v253 = vpop.f32.mrb[0].mxu0
  %v254 = vadd.f32 0.0, %v253
  %v255 = vpop.f32.mrb[0].mxu0
  %256 = vmatprep.mubr.f32.mxu0 0.0
  %257 = vmatmul.mubr.f32.gmra.mrb[0].mxu0 %v40
  %v258 = vpop.f32.mrb[0].mxu0
  %v259 = vadd.f32 0.0, %v258
  %v260 = vpop.f32.mrb[0].mxu0
  %261 = vmatprep.mubr.f32.mxu0 0.0
  %262 = vmatmul.mubr.f32.gmra.mrb[0].mxu0 %v41
  %v263 = vpop.f32.mrb[0].mxu0
  %v264 = vadd.f32 0.0, %v263
  %v265 = vpop.f32.mrb[0].mxu0
  %266 = vmatprep.mubr.f32.mxu0 0.0
  %267 = vmatmul.mubr.f32.gmra.mrb[0].mxu0 %v42
  %v268 = vpop.f32.mrb[0].mxu0
  %v269 = vadd.f32 0.0, %v268
  %v270 = vpop.f32.mrb[0].mxu0
  %271 = vmatprep.mubr.f32.mxu0 0.0
  %272 = vmatmul.mubr.f32.gmra.mrb[0].mxu0 %v43
  %v273 = vpop.f32.mrb[0].mxu0
  %v274 = vadd.f32 0.0, %v273
  %v275 = vpop.f32.mrb[0].mxu0
  %276 = vmatprep.mubr.f32.mxu0 0.0
  %277 = vmatmul.mubr.f32.gmra.mrb[0].mxu0 %v44
  %v278 = vpop.f32.mrb[0].mxu0
  %v279 = vadd.f32 0.0, %v278
  %v280 = vpop.f32.mrb[0].mxu0
  %281 = vmatprep.mubr.f32.mxu0 0.0
  %282 = vmatmul.mubr.f32.gmra.mrb[0].mxu0 %v45
  %v283 = vpop.f32.mrb[0].mxu0
  %v284 = vadd.f32 0.0, %v283
  %v285 = vpop.f32.mrb[0].mxu0
  %286 = vdwg.mxu0
  %p287 = scmp.eq.s32.totalorder 0, 0
  // Predicated region
  $region14: #{_lightgcn_forward.7} parent=0 // pred_check
    %p288 = pneg %p287
  $region15: #{_lightgcn_forward.7} parent=0 // pred_check_branch
    %290 = sbr.rel (%p288) target = $region17
  $region16: #{_lightgcn_forward.7} parent=0 // pred_region
    %v291 = vld [vmem:[%s2] sm:$0xff]
    %v292 = vld [vmem:[%s2 + $0x8] sm:$0xff]
    %v293 = vld [vmem:[%s2 + $0x10] sm:$0xff]
    %v294 = vld [vmem:[%s2 + $0x18] sm:$0xff]
    %v295 = vld [vmem:[%s2 + $0x20] sm:$0xff]
    %v296 = vld [vmem:[%s2 + $0x28] sm:$0xff]
    %v297 = vld [vmem:[%s2 + $0x30] sm:$0xff]
    %v298 = vld [vmem:[%s2 + $0x38] sm:$0xff]
    %v299 = vld [vmem:[%s2 + $0x40] sm:$0xff]
    %v300 = vld [vmem:[%s2 + $0x48] sm:$0xff]
    %v301 = vld [vmem:[%s2 + $0x50] sm:$0xff]
    %v302 = vld [vmem:[%s2 + $0x58] sm:$0xff]
    %v303 = vld [vmem:[%s2 + $0x60] sm:$0xff]
    %v304 = vld [vmem:[%s2 + $0x68] sm:$0xff]
    %v305 = vld [vmem:[%s2 + $0x70] sm:$0xff]
    %v306 = vld [vmem:[%s2 + $0x78] sm:$0xff]
    %v307 = vld [vmem:[%s2 + $0x80] sm:$0xff]
    %v308 = vld [vmem:[%s2 + $0x88] sm:$0xff]
    %v309 = vld [vmem:[%s2 + $0x90] sm:$0xff]
    %v310 = vld [vmem:[%s2 + $0x98] sm:$0xff]
    %v311 = vld [vmem:[%s2 + $0xa0] sm:$0xff]
    %v312 = vld [vmem:[%s2 + $0xa8] sm:$0xff]
    %v313 = vld [vmem:[%s2 + $0xb0] sm:$0xff]
    %v314 = vld [vmem:[%s2 + $0xb8] sm:$0xff]
    %v315 = vld [vmem:[%s2 + $0xc0] sm:$0xff]
    %v316 = vld [vmem:[%s2 + $0xc8] sm:$0xff]
    %v317 = vld [vmem:[%s2 + $0xd0] sm:$0xff]
    %v318 = vld [vmem:[%s2 + $0xd8] sm:$0xff]
    %v319 = vld [vmem:[%s2 + $0xe0] sm:$0xff]
    %v320 = vld [vmem:[%s2 + $0xe8] sm:$0xff]
    %v321 = vld [vmem:[%s2 + $0xf0] sm:$0xff]
    %v322 = vld [vmem:[%s2 + $0xf8] sm:$0xff]
    %v323 = vadd.f32 %v291, %v129
    %v324 = vadd.f32 %v292, %v134
    %v325 = vadd.f32 %v293, %v139
    %v326 = vadd.f32 %v294, %v144
    %v327 = vadd.f32 %v295, %v149
    %v328 = vadd.f32 %v296, %v154
    %v329 = vadd.f32 %v297, %v159
    %v330 = vadd.f32 %v298, %v164
    %v331 = vadd.f32 %v299, %v169
    %v332 = vadd.f32 %v300, %v174
    %v333 = vadd.f32 %v301, %v179
    %v334 = vadd.f32 %v302, %v184
    %v335 = vadd.f32 %v303, %v189
    %v336 = vadd.f32 %v304, %v194
    %v337 = vadd.f32 %v305, %v199
    %v338 = vadd.f32 %v306, %v204
    %v339 = vadd.f32 %v307, %v209
    %v340 = vadd.f32 %v308, %v214
    %v341 = vadd.f32 %v309, %v219
    %v342 = vadd.f32 %v310, %v224
    %v343 = vadd.f32 %v311, %v229
    %v344 = vadd.f32 %v312, %v234
    %v345 = vadd.f32 %v313, %v239
    %v346 = vadd.f32 %v314, %v244
    %v347 = vadd.f32 %v315, %v249
    %v348 = vadd.f32 %v316, %v254
    %v349 = vadd.f32 %v317, %v259
    %v350 = vadd.f32 %v318, %v264
    %v351 = vadd.f32 %v319, %v269
    %v352 = vadd.f32 %v320, %v274
    %v353 = vadd.f32 %v321, %v279
    %v354 = vadd.f32 %v322, %v284
    %355 = vst [vmem:[%s3] sm:$0xff] %v323
    %356 = vst [vmem:[%s3 + $0x8] sm:$0xff] %v324
    %357 = vst [vmem:[%s3 + $0x10] sm:$0xff] %v325
    %358 = vst [vmem:[%s3 + $0x18] sm:$0xff] %v326
    %359 = vst [vmem:[%s3 + $0x20] sm:$0xff] %v327
    %360 = vst [vmem:[%s3 + $0x28] sm:$0xff] %v328
    %361 = vst [vmem:[%s3 + $0x30] sm:$0xff] %v329
    %362 = vst [vmem:[%s3 + $0x38] sm:$0xff] %v330
    %363 = vst [vmem:[%s3 + $0x40] sm:$0xff] %v331
    %364 = vst [vmem:[%s3 + $0x48] sm:$0xff] %v332
    %365 = vst [vmem:[%s3 + $0x50] sm:$0xff] %v333
    %366 = vst [vmem:[%s3 + $0x58] sm:$0xff] %v334
    %367 = vst [vmem:[%s3 + $0x60] sm:$0xff] %v335
    %368 = vst [vmem:[%s3 + $0x68] sm:$0xff] %v336
    %369 = vst [vmem:[%s3 + $0x70] sm:$0xff] %v337
    %370 = vst [vmem:[%s3 + $0x78] sm:$0xff] %v338
    %371 = vst [vmem:[%s3 + $0x80] sm:$0xff] %v339
    %372 = vst [vmem:[%s3 + $0x88] sm:$0xff] %v340
    %373 = vst [vmem:[%s3 + $0x90] sm:$0xff] %v341
    %374 = vst [vmem:[%s3 + $0x98] sm:$0xff] %v342
    %375 = vst [vmem:[%s3 + $0xa0] sm:$0xff] %v343
    %376 = vst [vmem:[%s3 + $0xa8] sm:$0xff] %v344
    %377 = vst [vmem:[%s3 + $0xb0] sm:$0xff] %v345
    %378 = vst [vmem:[%s3 + $0xb8] sm:$0xff] %v346
    %379 = vst [vmem:[%s3 + $0xc0] sm:$0xff] %v347
    %380 = vst [vmem:[%s3 + $0xc8] sm:$0xff] %v348
    %381 = vst [vmem:[%s3 + $0xd0] sm:$0xff] %v349
    %382 = vst [vmem:[%s3 + $0xd8] sm:$0xff] %v350
    %383 = vst [vmem:[%s3 + $0xe0] sm:$0xff] %v351
    %384 = vst [vmem:[%s3 + $0xe8] sm:$0xff] %v352
    %385 = vst [vmem:[%s3 + $0xf0] sm:$0xff] %v353
    %386 = vst [vmem:[%s3 + $0xf8] sm:$0xff] %v354
  $region17: #{_lightgcn_forward.7} parent=0 // pred_fallthru
    _
  %p387 = scmp.gt.s32.totalorder 0, 0
  // Predicated region
  $region18: #{_lightgcn_forward.7} parent=0 // pred_check
    %p388 = pneg %p387
  $region19: #{_lightgcn_forward.7} parent=0 // pred_check_branch
    %390 = sbr.rel (%p388) target = $region21
  $region20: #{_lightgcn_forward.7} parent=0 // pred_region
    %v391 = vld [vmem:[%s3] sm:$0xff]
    %v392 = vld [vmem:[%s3 + $0x8] sm:$0xff]
    %v393 = vld [vmem:[%s3 + $0x10] sm:$0xff]
    %v394 = vld [vmem:[%s3 + $0x18] sm:$0xff]
    %v395 = vld [vmem:[%s3 + $0x20] sm:$0xff]
    %v396 = vld [vmem:[%s3 + $0x28] sm:$0xff]
    %v397 = vld [vmem:[%s3 + $0x30] sm:$0xff]
    %v398 = vld [vmem:[%s3 + $0x38] sm:$0xff]
    %v399 = vld [vmem:[%s3 + $0x40] sm:$0xff]
    %v400 = vld [vmem:[%s3 + $0x48] sm:$0xff]
    %v401 = vld [vmem:[%s3 + $0x50] sm:$0xff]
    %v402 = vld [vmem:[%s3 + $0x58] sm:$0xff]
    %v403 = vld [vmem:[%s3 + $0x60] sm:$0xff]
    %v404 = vld [vmem:[%s3 + $0x68] sm:$0xff]
    %v405 = vld [vmem:[%s3 + $0x70] sm:$0xff]
    %v406 = vld [vmem:[%s3 + $0x78] sm:$0xff]
    %v407 = vld [vmem:[%s3 + $0x80] sm:$0xff]
    %v408 = vld [vmem:[%s3 + $0x88] sm:$0xff]
    %v409 = vld [vmem:[%s3 + $0x90] sm:$0xff]
    %v410 = vld [vmem:[%s3 + $0x98] sm:$0xff]
    %v411 = vld [vmem:[%s3 + $0xa0] sm:$0xff]
    %v412 = vld [vmem:[%s3 + $0xa8] sm:$0xff]
    %v413 = vld [vmem:[%s3 + $0xb0] sm:$0xff]
    %v414 = vld [vmem:[%s3 + $0xb8] sm:$0xff]
    %v415 = vld [vmem:[%s3 + $0xc0] sm:$0xff]
    %v416 = vld [vmem:[%s3 + $0xc8] sm:$0xff]
    %v417 = vld [vmem:[%s3 + $0xd0] sm:$0xff]
    %v418 = vld [vmem:[%s3 + $0xd8] sm:$0xff]
    %v419 = vld [vmem:[%s3 + $0xe0] sm:$0xff]
    %v420 = vld [vmem:[%s3 + $0xe8] sm:$0xff]
    %v421 = vld [vmem:[%s3 + $0xf0] sm:$0xff]
    %v422 = vld [vmem:[%s3 + $0xf8] sm:$0xff]
    %v423 = vadd.f32 %v391, %v129
    %v424 = vadd.f32 %v392, %v134
    %v425 = vadd.f32 %v393, %v139
    %v426 = vadd.f32 %v394, %v144
    %v427 = vadd.f32 %v395, %v149
    %v428 = vadd.f32 %v396, %v154
    %v429 = vadd.f32 %v397, %v159
    %v430 = vadd.f32 %v398, %v164
    %v431 = vadd.f32 %v399, %v169
    %v432 = vadd.f32 %v400, %v174
    %v433 = vadd.f32 %v401, %v179
    %v434 = vadd.f32 %v402, %v184
    %v435 = vadd.f32 %v403, %v189
    %v436 = vadd.f32 %v404, %v194
    %v437 = vadd.f32 %v405, %v199
    %v438 = vadd.f32 %v406, %v204
    %v439 = vadd.f32 %v407, %v209
    %v440 = vadd.f32 %v408, %v214
    %v441 = vadd.f32 %v409, %v219
    %v442 = vadd.f32 %v410, %v224
    %v443 = vadd.f32 %v411, %v229
    %v444 = vadd.f32 %v412, %v234
    %v445 = vadd.f32 %v413, %v239
    %v446 = vadd.f32 %v414, %v244
    %v447 = vadd.f32 %v415, %v249
    %v448 = vadd.f32 %v416, %v254
    %v449 = vadd.f32 %v417, %v259
    %v450 = vadd.f32 %v418, %v264
    %v451 = vadd.f32 %v419, %v269
    %v452 = vadd.f32 %v420, %v274
    %v453 = vadd.f32 %v421, %v279
    %v454 = vadd.f32 %v422, %v284
    %455 = vst [vmem:[%s3] sm:$0xff] %v423
    %456 = vst [vmem:[%s3 + $0x8] sm:$0xff] %v424
    %457 = vst [vmem:[%s3 + $0x10] sm:$0xff] %v425
    %458 = vst [vmem:[%s3 + $0x18] sm:$0xff] %v426
    %459 = vst [vmem:[%s3 + $0x20] sm:$0xff] %v427
    %460 = vst [vmem:[%s3 + $0x28] sm:$0xff] %v428
    %461 = vst [vmem:[%s3 + $0x30] sm:$0xff] %v429
    %462 = vst [vmem:[%s3 + $0x38] sm:$0xff] %v430
    %463 = vst [vmem:[%s3 + $0x40] sm:$0xff] %v431
    %464 = vst [vmem:[%s3 + $0x48] sm:$0xff] %v432
    %465 = vst [vmem:[%s3 + $0x50] sm:$0xff] %v433
    %466 = vst [vmem:[%s3 + $0x58] sm:$0xff] %v434
    %467 = vst [vmem:[%s3 + $0x60] sm:$0xff] %v435
    %468 = vst [vmem:[%s3 + $0x68] sm:$0xff] %v436
    %469 = vst [vmem:[%s3 + $0x70] sm:$0xff] %v437
    %470 = vst [vmem:[%s3 + $0x78] sm:$0xff] %v438
    %471 = vst [vmem:[%s3 + $0x80] sm:$0xff] %v439
    %472 = vst [vmem:[%s3 + $0x88] sm:$0xff] %v440
    %473 = vst [vmem:[%s3 + $0x90] sm:$0xff] %v441
    %474 = vst [vmem:[%s3 + $0x98] sm:$0xff] %v442
    %475 = vst [vmem:[%s3 + $0xa0] sm:$0xff] %v443
    %476 = vst [vmem:[%s3 + $0xa8] sm:$0xff] %v444
    %477 = vst [vmem:[%s3 + $0xb0] sm:$0xff] %v445
    %478 = vst [vmem:[%s3 + $0xb8] sm:$0xff] %v446
    %479 = vst [vmem:[%s3 + $0xc0] sm:$0xff] %v447
    %480 = vst [vmem:[%s3 + $0xc8] sm:$0xff] %v448
    %481 = vst [vmem:[%s3 + $0xd0] sm:$0xff] %v449
    %482 = vst [vmem:[%s3 + $0xd8] sm:$0xff] %v450
    %483 = vst [vmem:[%s3 + $0xe0] sm:$0xff] %v451
    %484 = vst [vmem:[%s3 + $0xe8] sm:$0xff] %v452
    %485 = vst [vmem:[%s3 + $0xf0] sm:$0xff] %v453
    %486 = vst [vmem:[%s3 + $0xf8] sm:$0xff] %v454
  $region21: #{_lightgcn_forward.7} parent=0 // pred_fallthru
    _
  // Predicated region
  $region22: #{_lightgcn_forward.7} parent=0 // pred_check
    %p487 = pneg %p287
  $region23: #{_lightgcn_forward.7} parent=0 // pred_check_branch
    %489 = sbr.rel (%p487) target = $region25
  $region24: #{_lightgcn_forward.7} parent=0 // pred_region
    %v490 = vld [vmem:[%s3] sm:$0xff]
    %v491 = vld [vmem:[%s3 + $0x8] sm:$0xff]
    %v492 = vld [vmem:[%s3 + $0x10] sm:$0xff]
    %v493 = vld [vmem:[%s3 + $0x18] sm:$0xff]
    %v494 = vld [vmem:[%s3 + $0x20] sm:$0xff]
    %v495 = vld [vmem:[%s3 + $0x28] sm:$0xff]
    %v496 = vld [vmem:[%s3 + $0x30] sm:$0xff]
    %v497 = vld [vmem:[%s3 + $0x38] sm:$0xff]
    %v498 = vld [vmem:[%s3 + $0x40] sm:$0xff]
    %v499 = vld [vmem:[%s3 + $0x48] sm:$0xff]
    %v500 = vld [vmem:[%s3 + $0x50] sm:$0xff]
    %v501 = vld [vmem:[%s3 + $0x58] sm:$0xff]
    %v502 = vld [vmem:[%s3 + $0x60] sm:$0xff]
    %v503 = vld [vmem:[%s3 + $0x68] sm:$0xff]
    %v504 = vld [vmem:[%s3 + $0x70] sm:$0xff]
    %v505 = vld [vmem:[%s3 + $0x78] sm:$0xff]
    %v506 = vld [vmem:[%s3 + $0x80] sm:$0xff]
    %v507 = vld [vmem:[%s3 + $0x88] sm:$0xff]
    %v508 = vld [vmem:[%s3 + $0x90] sm:$0xff]
    %v509 = vld [vmem:[%s3 + $0x98] sm:$0xff]
    %v510 = vld [vmem:[%s3 + $0xa0] sm:$0xff]
    %v511 = vld [vmem:[%s3 + $0xa8] sm:$0xff]
    %v512 = vld [vmem:[%s3 + $0xb0] sm:$0xff]
    %v513 = vld [vmem:[%s3 + $0xb8] sm:$0xff]
    %v514 = vld [vmem:[%s3 + $0xc0] sm:$0xff]
    %v515 = vld [vmem:[%s3 + $0xc8] sm:$0xff]
    %v516 = vld [vmem:[%s3 + $0xd0] sm:$0xff]
    %v517 = vld [vmem:[%s3 + $0xd8] sm:$0xff]
    %v518 = vld [vmem:[%s3 + $0xe0] sm:$0xff]
    %v519 = vld [vmem:[%s3 + $0xe8] sm:$0xff]
    %v520 = vld [vmem:[%s3 + $0xf0] sm:$0xff]
    %v521 = vld [vmem:[%s3 + $0xf8] sm:$0xff]
    %v522 = vmul.f32 %v490, 0.33333334
    %v523 = vmul.f32 %v491, 0.33333334
    %v524 = vmul.f32 %v492, 0.33333334
    %v525 = vmul.f32 %v493, 0.33333334
    %v526 = vmul.f32 %v494, 0.33333334
    %v527 = vmul.f32 %v495, 0.33333334
    %v528 = vmul.f32 %v496, 0.33333334
    %v529 = vmul.f32 %v497, 0.33333334
    %v530 = vmul.f32 %v498, 0.33333334
    %v531 = vmul.f32 %v499, 0.33333334
    %v532 = vmul.f32 %v500, 0.33333334
    %v533 = vmul.f32 %v501, 0.33333334
    %v534 = vmul.f32 %v502, 0.33333334
    %v535 = vmul.f32 %v503, 0.33333334
    %v536 = vmul.f32 %v504, 0.33333334
    %v537 = vmul.f32 %v505, 0.33333334
    %v538 = vmul.f32 %v506, 0.33333334
    %v539 = vmul.f32 %v507, 0.33333334
    %v540 = vmul.f32 %v508, 0.33333334
    %v541 = vmul.f32 %v509, 0.33333334
    %v542 = vmul.f32 %v510, 0.33333334
    %v543 = vmul.f32 %v511, 0.33333334
    %v544 = vmul.f32 %v512, 0.33333334
    %v545 = vmul.f32 %v513, 0.33333334
    %v546 = vmul.f32 %v514, 0.33333334
    %v547 = vmul.f32 %v515, 0.33333334
    %v548 = vmul.f32 %v516, 0.33333334
    %v549 = vmul.f32 %v517, 0.33333334
    %v550 = vmul.f32 %v518, 0.33333334
    %v551 = vmul.f32 %v519, 0.33333334
    %v552 = vmul.f32 %v520, 0.33333334
    %v553 = vmul.f32 %v521, 0.33333334
    %554 = vst [vmem:[%s3] sm:$0xff] %v522
    %555 = vst [vmem:[%s3 + $0x8] sm:$0xff] %v523
    %556 = vst [vmem:[%s3 + $0x10] sm:$0xff] %v524
    %557 = vst [vmem:[%s3 + $0x18] sm:$0xff] %v525
    %558 = vst [vmem:[%s3 + $0x20] sm:$0xff] %v526
    %559 = vst [vmem:[%s3 + $0x28] sm:$0xff] %v527
    %560 = vst [vmem:[%s3 + $0x30] sm:$0xff] %v528
    %561 = vst [vmem:[%s3 + $0x38] sm:$0xff] %v529
    %562 = vst [vmem:[%s3 + $0x40] sm:$0xff] %v530
    %563 = vst [vmem:[%s3 + $0x48] sm:$0xff] %v531
    %564 = vst [vmem:[%s3 + $0x50] sm:$0xff] %v532
    %565 = vst [vmem:[%s3 + $0x58] sm:$0xff] %v533
    %566 = vst [vmem:[%s3 + $0x60] sm:$0xff] %v534
    %567 = vst [vmem:[%s3 + $0x68] sm:$0xff] %v535
    %568 = vst [vmem:[%s3 + $0x70] sm:$0xff] %v536
    %569 = vst [vmem:[%s3 + $0x78] sm:$0xff] %v537
    %570 = vst [vmem:[%s3 + $0x80] sm:$0xff] %v538
    %571 = vst [vmem:[%s3 + $0x88] sm:$0xff] %v539
    %572 = vst [vmem:[%s3 + $0x90] sm:$0xff] %v540
    %573 = vst [vmem:[%s3 + $0x98] sm:$0xff] %v541
    %574 = vst [vmem:[%s3 + $0xa0] sm:$0xff] %v542
    %575 = vst [vmem:[%s3 + $0xa8] sm:$0xff] %v543
    %576 = vst [vmem:[%s3 + $0xb0] sm:$0xff] %v544
    %577 = vst [vmem:[%s3 + $0xb8] sm:$0xff] %v545
    %578 = vst [vmem:[%s3 + $0xc0] sm:$0xff] %v546
    %579 = vst [vmem:[%s3 + $0xc8] sm:$0xff] %v547
    %580 = vst [vmem:[%s3 + $0xd0] sm:$0xff] %v548
    %581 = vst [vmem:[%s3 + $0xd8] sm:$0xff] %v549
    %582 = vst [vmem:[%s3 + $0xe0] sm:$0xff] %v550
    %583 = vst [vmem:[%s3 + $0xe8] sm:$0xff] %v551
    %584 = vst [vmem:[%s3 + $0xf0] sm:$0xff] %v552
    %585 = vst [vmem:[%s3 + $0xf8] sm:$0xff] %v553
  $region25: #{_lightgcn_forward.7} parent=0 // pred_fallthru
    _
  // Predicated region
  $region26: #{_lightgcn_forward.7} parent=0 // pred_check
    _
  $region27: #{_lightgcn_forward.7} parent=0 // pred_check_branch
    %587 = sbr.rel (0) target = $region29
  $region28: #{_lightgcn_forward.7} parent=0 // pred_region
    _
  $region29: #{_lightgcn_forward.7} parent=0 // pred_fallthru
    _
  // Predicated region
  $region30: #{_lightgcn_forward.7} parent=0 // pred_check
    _
  $region31: #{_lightgcn_forward.7} parent=0 // pred_check_branch
    %589 = sbr.rel (0) target = $region33
  $region32: #{_lightgcn_forward.7} parent=0 // pred_region
    _
  $region33: #{_lightgcn_forward.7} parent=0 // pred_fallthru
    _

// kernel: _lightgcn_forward.6
$region0: #{_lightgcn_forward.6}
  #allocation0 [shape = 'u32[]', space=smem, size = 0x4, offset = 0x4, fixed_abs, tag = 'smem constant byte address 0x4 - core index']
  #allocation1 [shape = 'u32[144,128]{1,0:T(1,128)}', space=vmem, size = 0x12000, scoped, tag = 'internal scratch']
  %s0 = inlined_call_operand.vmem [shape: f32[128,256], index: 0, kind: input, shape index: {}]
  %s1 = inlined_call_operand.vmem [shape: f32[256,128], index: 1, kind: input, shape index: {}]
  %s2 = inlined_call_operand.vmem [shape: f32[128,128], index: 2, kind: input, shape index: {}, may-alias: {2,3}]
  %s3 = inlined_call_operand.vmem [shape: f32[128,128], index: 3, kind: output, shape index: {}, may-alias: {2,3}]
  %s4 = sld [smem:[#allocation0]]
  $region34: #{_lightgcn_forward.6} parent=0
    _
  %s6 = ssub.s32 1, %s4
  %s7 = scalar_select 0, %s6, %s4
  // Predicated region
  $region2: #{_lightgcn_forward.6} parent=0 // pred_check
    _
  $region3: #{_lightgcn_forward.6} parent=0 // pred_check_branch
    %9 = sbr.rel (0) target = $region5
  $region4: #{_lightgcn_forward.6} parent=0 // pred_region
    _
  $region5: #{_lightgcn_forward.6} parent=0 // pred_fallthru
    _
  // Predicated region
  $region6: #{_lightgcn_forward.6} parent=0 // pred_check
    _
  $region7: #{_lightgcn_forward.6} parent=0 // pred_check_branch
    %11 = sbr.rel (0) target = $region9
  $region8: #{_lightgcn_forward.6} parent=0 // pred_region
    _
  $region9: #{_lightgcn_forward.6} parent=0 // pred_fallthru
    _
  // Predicated region
  $region10: #{_lightgcn_forward.6} parent=0 // pred_check
    _
  $region11: #{_lightgcn_forward.6} parent=0 // pred_check_branch
    %13 = sbr.rel (0) target = $region13
  $region12: #{_lightgcn_forward.6} parent=0 // pred_region
    _
  $region13: #{_lightgcn_forward.6} parent=0 // pred_fallthru
    _
  %v14 = vld [vmem:[%s0] sm:$0xff]
  %v15 = vld [vmem:[%s0 + $0x8] sm:$0xff]
  %v16 = vld [vmem:[%s0 + $0x10] sm:$0xff]
  %v17 = vld [vmem:[%s0 + $0x18] sm:$0xff]
  %v18 = vld [vmem:[%s0 + $0x20] sm:$0xff]
  %v19 = vld [vmem:[%s0 + $0x28] sm:$0xff]
  %v20 = vld [vmem:[%s0 + $0x30] sm:$0xff]
  %v21 = vld [vmem:[%s0 + $0x38] sm:$0xff]
  %v22 = vld [vmem:[%s0 + $0x40] sm:$0xff]
  %v23 = vld [vmem:[%s0 + $0x48] sm:$0xff]
  %v24 = vld [vmem:[%s0 + $0x50] sm:$0xff]
  %v25 = vld [vmem:[%s0 + $0x58] sm:$0xff]
  %v26 = vld [vmem:[%s0 + $0x60] sm:$0xff]
  %v27 = vld [vmem:[%s0 + $0x68] sm:$0xff]
  %v28 = vld [vmem:[%s0 + $0x70] sm:$0xff]
  %v29 = vld [vmem:[%s0 + $0x78] sm:$0xff]
  %v30 = vld [vmem:[%s0 + $0x80] sm:$0xff]
  %v31 = vld [vmem:[%s0 + $0x88] sm:$0xff]
  %v32 = vld [vmem:[%s0 + $0x90] sm:$0xff]
  %v33 = vld [vmem:[%s0 + $0x98] sm:$0xff]
  %v34 = vld [vmem:[%s0 + $0xa0] sm:$0xff]
  %v35 = vld [vmem:[%s0 + $0xa8] sm:$0xff]
  %v36 = vld [vmem:[%s0 + $0xb0] sm:$0xff]
  %v37 = vld [vmem:[%s0 + $0xb8] sm:$0xff]
  %v38 = vld [vmem:[%s0 + $0xc0] sm:$0xff]
  %v39 = vld [vmem:[%s0 + $0xc8] sm:$0xff]
  %v40 = vld [vmem:[%s0 + $0xd0] sm:$0xff]
  %v41 = vld [vmem:[%s0 + $0xd8] sm:$0xff]
  %v42 = vld [vmem:[%s0 + $0xe0] sm:$0xff]
  %v43 = vld [vmem:[%s0 + $0xe8] sm:$0xff]
  %v44 = vld [vmem:[%s0 + $0xf0] sm:$0xff]
  %v45 = vld [vmem:[%s0 + $0xf8] sm:$0xff]
  %v46 = vld [vmem:[%s1] sm:$0xff]
  %v47 = vld [vmem:[%s1 + $0x8] sm:$0xff]
  %v48 = vld [vmem:[%s1 + $0x10] sm:$0xff]
  %v49 = vld [vmem:[%s1 + $0x18] sm:$0xff]
  %v50 = vld [vmem:[%s1 + $0x20] sm:$0xff]
  %v51 = vld [vmem:[%s1 + $0x28] sm:$0xff]
  %v52 = vld [vmem:[%s1 + $0x30] sm:$0xff]
  %v53 = vld [vmem:[%s1 + $0x38] sm:$0xff]
  %v54 = vld [vmem:[%s1 + $0x40] sm:$0xff]
  %v55 = vld [vmem:[%s1 + $0x48] sm:$0xff]
  %v56 = vld [vmem:[%s1 + $0x50] sm:$0xff]
  %v57 = vld [vmem:[%s1 + $0x58] sm:$0xff]
  %v58 = vld [vmem:[%s1 + $0x60] sm:$0xff]
  %v59 = vld [vmem:[%s1 + $0x68] sm:$0xff]
  %v60 = vld [vmem:[%s1 + $0x70] sm:$0xff]
  %v61 = vld [vmem:[%s1 + $0x78] sm:$0xff]
  %v62 = vld [vmem:[%s1 + $0x80] sm:$0xff]
  %v63 = vld [vmem:[%s1 + $0x88] sm:$0xff]
  %v64 = vld [vmem:[%s1 + $0x90] sm:$0xff]
  %v65 = vld [vmem:[%s1 + $0x98] sm:$0xff]
  %v66 = vld [vmem:[%s1 + $0xa0] sm:$0xff]
  %v67 = vld [vmem:[%s1 + $0xa8] sm:$0xff]
  %v68 = vld [vmem:[%s1 + $0xb0] sm:$0xff]
  %v69 = vld [vmem:[%s1 + $0xb8] sm:$0xff]
  %v70 = vld [vmem:[%s1 + $0xc0] sm:$0xff]
  %v71 = vld [vmem:[%s1 + $0xc8] sm:$0xff]
  %v72 = vld [vmem:[%s1 + $0xd0] sm:$0xff]
  %v73 = vld [vmem:[%s1 + $0xd8] sm:$0xff]
  %v74 = vld [vmem:[%s1 + $0xe0] sm:$0xff]
  %v75 = vld [vmem:[%s1 + $0xe8] sm:$0xff]
  %v76 = vld [vmem:[%s1 + $0xf0] sm:$0xff]
  %v77 = vld [vmem:[%s1 + $0xf8] sm:$0xff]
  %78 = vmatprep.subr.mxu0 0.0
  %79 = vmatpush1.msra.mxu0 %v46
  %80 = vmatprep.subr.mxu0 0.0
  %81 = vmatpush1.msra.mxu0 %v47
  %82 = vmatprep.subr.mxu0 0.0
  %83 = vmatpush1.msra.mxu0 %v48
  %84 = vmatprep.subr.mxu0 0.0
  %85 = vmatpush1.msra.mxu0 %v49
  %86 = vmatprep.subr.mxu0 0.0
  %87 = vmatpush1.msra.mxu0 %v50
  %88 = vmatprep.subr.mxu0 0.0
  %89 = vmatpush1.msra.mxu0 %v51
  %90 = vmatprep.subr.mxu0 0.0
  %91 = vmatpush1.msra.mxu0 %v52
  %92 = vmatprep.subr.mxu0 0.0
  %93 = vmatpush1.msra.mxu0 %v53
  %94 = vmatprep.subr.mxu0 0.0
  %95 = vmatpush1.msra.mxu0 %v54
  %96 = vmatprep.subr.mxu0 0.0
  %97 = vmatpush1.msra.mxu0 %v55
  %98 = vmatprep.subr.mxu0 0.0
  %99 = vmatpush1.msra.mxu0 %v56
  %100 = vmatprep.subr.mxu0 0.0
  %101 = vmatpush1.msra.mxu0 %v57
  %102 = vmatprep.subr.mxu0 0.0
  %103 = vmatpush1.msra.mxu0 %v58
  %104 = vmatprep.subr.mxu0 0.0
  %105 = vmatpush1.msra.mxu0 %v59
  %106 = vmatprep.subr.mxu0 0.0
  %107 = vmatpush1.msra.mxu0 %v60
  %108 = vmatprep.subr.mxu0 0.0
  %109 = vmatpush1.msra.mxu0 %v61
  %110 = vmatprep.subr.mxu0 0.0
  %111 = vmatpush1.msra.mxu0 %v62
  %112 = vmatprep.subr.mxu0 0.0
  %113 = vmatpush1.msra.mxu0 %v63
  %114 = vmatprep.subr.mxu0 0.0
  %115 = vmatpush1.msra.mxu0 %v64
  %116 = vmatprep.subr.mxu0 0.0
  %117 = vmatpush1.msra.mxu0 %v65
  %118 = vmatprep.subr.mxu0 0.0
  %119 = vmatpush1.msra.mxu0 %v66
  %120 = vmatprep.subr.mxu0 0.0
  %121 = vmatpush1.msra.mxu0 %v67
  %122 = vmatprep.subr.mxu0 0.0
  %123 = vmatpush1.msra.mxu0 %v68
  %124 = vmatprep.subr.mxu0 0.0
  %125 = vmatpush1.msra.mxu0 %v69
  %126 = vmatprep.subr.mxu0 0.0
  %127 = vmatpush1.msra.mxu0 %v70
  %128 = vmatprep.subr.mxu0 0.0
  %129 = vmatpush1.msra.mxu0 %v71
  %130 = vmatprep.subr.mxu0 0.0
  %131 = vmatpush1.msra.mxu0 %v72
  %132 = vmatprep.subr.mxu0 0.0
  %133 = vmatpush1.msra.mxu0 %v73
  %134 = vmatprep.subr.mxu0 0.0
  %135 = vmatpush1.msra.mxu0 %v74
  %136 = vmatprep.subr.mxu0 0.0
  %137 = vmatpush1.msra.mxu0 %v75
  %138 = vmatprep.subr.mxu0 0.0
  %139 = vmatpush1.msra.mxu0 %v76
  %140 = vmatprep.subr.mxu0 0.0
  %141 = vmatpush1.msra.mxu0 %v77
  %142 = vmatprep.mubr.f32.mxu0 %v15
  %143 = vmatmul.mubr.f32.gmra.mrb[0].mxu0 %v14
  %v144 = vpop.f32.mrb[0].mxu0
  %v145 = vadd.f32 0.0, %v144
  %v146 = vpop.f32.mrb[0].mxu0
  %147 = vmatprep.mubr.f32.mxu0 %v17
  %148 = vmatmul.mubr.f32.gmra.mrb[0].mxu0 %v16
  %v149 = vpop.f32.mrb[0].mxu0
  %v150 = vadd.f32 0.0, %v149
  %v151 = vpop.f32.mrb[0].mxu0
  %152 = vmatprep.mubr.f32.mxu0 %v19
  %153 = vmatmul.mubr.f32.gmra.mrb[0].mxu0 %v18
  %v154 = vpop.f32.mrb[0].mxu0
  %v155 = vadd.f32 0.0, %v154
  %v156 = vpop.f32.mrb[0].mxu0
  %157 = vmatprep.mubr.f32.mxu0 %v21
  %158 = vmatmul.mubr.f32.gmra.mrb[0].mxu0 %v20
  %v159 = vpop.f32.mrb[0].mxu0
  %v160 = vadd.f32 0.0, %v159
  %v161 = vpop.f32.mrb[0].mxu0
  %162 = vmatprep.mubr.f32.mxu0 %v23
  %163 = vmatmul.mubr.f32.gmra.mrb[0].mxu0 %v22
  %v164 = vpop.f32.mrb[0].mxu0
  %v165 = vadd.f32 0.0, %v164
  %v166 = vpop.f32.mrb[0].mxu0
  %167 = vmatprep.mubr.f32.mxu0 %v25
  %168 = vmatmul.mubr.f32.gmra.mrb[0].mxu0 %v24
  %v169 = vpop.f32.mrb[0].mxu0
  %v170 = vadd.f32 0.0, %v169
  %v171 = vpop.f32.mrb[0].mxu0
  %172 = vmatprep.mubr.f32.mxu0 %v27
  %173 = vmatmul.mubr.f32.gmra.mrb[0].mxu0 %v26
  %v174 = vpop.f32.mrb[0].mxu0
  %v175 = vadd.f32 0.0, %v174
  %v176 = vpop.f32.mrb[0].mxu0
  %177 = vmatprep.mubr.f32.mxu0 %v29
  %178 = vmatmul.mubr.f32.gmra.mrb[0].mxu0 %v28
  %v179 = vpop.f32.mrb[0].mxu0
  %v180 = vadd.f32 0.0, %v179
  %v181 = vpop.f32.mrb[0].mxu0
  %182 = vmatprep.mubr.f32.mxu0 %v31
  %183 = vmatmul.mubr.f32.gmra.mrb[0].mxu0 %v30
  %v184 = vpop.f32.mrb[0].mxu0
  %v185 = vadd.f32 0.0, %v184
  %v186 = vpop.f32.mrb[0].mxu0
  %187 = vmatprep.mubr.f32.mxu0 %v33
  %188 = vmatmul.mubr.f32.gmra.mrb[0].mxu0 %v32
  %v189 = vpop.f32.mrb[0].mxu0
  %v190 = vadd.f32 0.0, %v189
  %v191 = vpop.f32.mrb[0].mxu0
  %192 = vmatprep.mubr.f32.mxu0 %v35
  %193 = vmatmul.mubr.f32.gmra.mrb[0].mxu0 %v34
  %v194 = vpop.f32.mrb[0].mxu0
  %v195 = vadd.f32 0.0, %v194
  %v196 = vpop.f32.mrb[0].mxu0
  %197 = vmatprep.mubr.f32.mxu0 %v37
  %198 = vmatmul.mubr.f32.gmra.mrb[0].mxu0 %v36
  %v199 = vpop.f32.mrb[0].mxu0
  %v200 = vadd.f32 0.0, %v199
  %v201 = vpop.f32.mrb[0].mxu0
  %202 = vmatprep.mubr.f32.mxu0 %v39
  %203 = vmatmul.mubr.f32.gmra.mrb[0].mxu0 %v38
  %v204 = vpop.f32.mrb[0].mxu0
  %v205 = vadd.f32 0.0, %v204
  %v206 = vpop.f32.mrb[0].mxu0
  %207 = vmatprep.mubr.f32.mxu0 %v41
  %208 = vmatmul.mubr.f32.gmra.mrb[0].mxu0 %v40
  %v209 = vpop.f32.mrb[0].mxu0
  %v210 = vadd.f32 0.0, %v209
  %v211 = vpop.f32.mrb[0].mxu0
  %212 = vmatprep.mubr.f32.mxu0 %v43
  %213 = vmatmul.mubr.f32.gmra.mrb[0].mxu0 %v42
  %v214 = vpop.f32.mrb[0].mxu0
  %v215 = vadd.f32 0.0, %v214
  %v216 = vpop.f32.mrb[0].mxu0
  %217 = vmatprep.mubr.f32.mxu0 %v45
  %218 = vmatmul.mubr.f32.gmra.mrb[0].mxu0 %v44
  %v219 = vpop.f32.mrb[0].mxu0
  %v220 = vadd.f32 0.0, %v219
  %v221 = vpop.f32.mrb[0].mxu0
  %222 = vdwg.mxu0
  %p223 = scmp.eq.s32.totalorder 0, 0
  // Predicated region
  $region14: #{_lightgcn_forward.6} parent=0 // pred_check
    %p224 = pneg %p223
  $region15: #{_lightgcn_forward.6} parent=0 // pred_check_branch
    %226 = sbr.rel (%p224) target = $region17
  $region16: #{_lightgcn_forward.6} parent=0 // pred_region
    %v227 = vld [vmem:[%s2] sm:$0xff]
    %v228 = vld [vmem:[%s2 + $0x8] sm:$0xff]
    %v229 = vld [vmem:[%s2 + $0x10] sm:$0xff]
    %v230 = vld [vmem:[%s2 + $0x18] sm:$0xff]
    %v231 = vld [vmem:[%s2 + $0x20] sm:$0xff]
    %v232 = vld [vmem:[%s2 + $0x28] sm:$0xff]
    %v233 = vld [vmem:[%s2 + $0x30] sm:$0xff]
    %v234 = vld [vmem:[%s2 + $0x38] sm:$0xff]
    %v235 = vld [vmem:[%s2 + $0x40] sm:$0xff]
    %v236 = vld [vmem:[%s2 + $0x48] sm:$0xff]
    %v237 = vld [vmem:[%s2 + $0x50] sm:$0xff]
    %v238 = vld [vmem:[%s2 + $0x58] sm:$0xff]
    %v239 = vld [vmem:[%s2 + $0x60] sm:$0xff]
    %v240 = vld [vmem:[%s2 + $0x68] sm:$0xff]
    %v241 = vld [vmem:[%s2 + $0x70] sm:$0xff]
    %v242 = vld [vmem:[%s2 + $0x78] sm:$0xff]
    %v243 = vadd.f32 %v227, %v145
    %v244 = vadd.f32 %v228, %v150
    %v245 = vadd.f32 %v229, %v155
    %v246 = vadd.f32 %v230, %v160
    %v247 = vadd.f32 %v231, %v165
    %v248 = vadd.f32 %v232, %v170
    %v249 = vadd.f32 %v233, %v175
    %v250 = vadd.f32 %v234, %v180
    %v251 = vadd.f32 %v235, %v185
    %v252 = vadd.f32 %v236, %v190
    %v253 = vadd.f32 %v237, %v195
    %v254 = vadd.f32 %v238, %v200
    %v255 = vadd.f32 %v239, %v205
    %v256 = vadd.f32 %v240, %v210
    %v257 = vadd.f32 %v241, %v215
    %v258 = vadd.f32 %v242, %v220
    %259 = vst [vmem:[%s3] sm:$0xff] %v243
    %260 = vst [vmem:[%s3 + $0x8] sm:$0xff] %v244
    %261 = vst [vmem:[%s3 + $0x10] sm:$0xff] %v245
    %262 = vst [vmem:[%s3 + $0x18] sm:$0xff] %v246
    %263 = vst [vmem:[%s3 + $0x20] sm:$0xff] %v247
    %264 = vst [vmem:[%s3 + $0x28] sm:$0xff] %v248
    %265 = vst [vmem:[%s3 + $0x30] sm:$0xff] %v249
    %266 = vst [vmem:[%s3 + $0x38] sm:$0xff] %v250
    %267 = vst [vmem:[%s3 + $0x40] sm:$0xff] %v251
    %268 = vst [vmem:[%s3 + $0x48] sm:$0xff] %v252
    %269 = vst [vmem:[%s3 + $0x50] sm:$0xff] %v253
    %270 = vst [vmem:[%s3 + $0x58] sm:$0xff] %v254
    %271 = vst [vmem:[%s3 + $0x60] sm:$0xff] %v255
    %272 = vst [vmem:[%s3 + $0x68] sm:$0xff] %v256
    %273 = vst [vmem:[%s3 + $0x70] sm:$0xff] %v257
    %274 = vst [vmem:[%s3 + $0x78] sm:$0xff] %v258
  $region17: #{_lightgcn_forward.6} parent=0 // pred_fallthru
    _
  %p275 = scmp.gt.s32.totalorder 0, 0
  // Predicated region
  $region18: #{_lightgcn_forward.6} parent=0 // pred_check
    %p276 = pneg %p275
  $region19: #{_lightgcn_forward.6} parent=0 // pred_check_branch
    %278 = sbr.rel (%p276) target = $region21
  $region20: #{_lightgcn_forward.6} parent=0 // pred_region
    %v279 = vld [vmem:[%s3] sm:$0xff]
    %v280 = vld [vmem:[%s3 + $0x8] sm:$0xff]
    %v281 = vld [vmem:[%s3 + $0x10] sm:$0xff]
    %v282 = vld [vmem:[%s3 + $0x18] sm:$0xff]
    %v283 = vld [vmem:[%s3 + $0x20] sm:$0xff]
    %v284 = vld [vmem:[%s3 + $0x28] sm:$0xff]
    %v285 = vld [vmem:[%s3 + $0x30] sm:$0xff]
    %v286 = vld [vmem:[%s3 + $0x38] sm:$0xff]
    %v287 = vld [vmem:[%s3 + $0x40] sm:$0xff]
    %v288 = vld [vmem:[%s3 + $0x48] sm:$0xff]
    %v289 = vld [vmem:[%s3 + $0x50] sm:$0xff]
    %v290 = vld [vmem:[%s3 + $0x58] sm:$0xff]
    %v291 = vld [vmem:[%s3 + $0x60] sm:$0xff]
    %v292 = vld [vmem:[%s3 + $0x68] sm:$0xff]
    %v293 = vld [vmem:[%s3 + $0x70] sm:$0xff]
    %v294 = vld [vmem:[%s3 + $0x78] sm:$0xff]
    %v295 = vadd.f32 %v279, %v145
    %v296 = vadd.f32 %v280, %v150
    %v297 = vadd.f32 %v281, %v155
    %v298 = vadd.f32 %v282, %v160
    %v299 = vadd.f32 %v283, %v165
    %v300 = vadd.f32 %v284, %v170
    %v301 = vadd.f32 %v285, %v175
    %v302 = vadd.f32 %v286, %v180
    %v303 = vadd.f32 %v287, %v185
    %v304 = vadd.f32 %v288, %v190
    %v305 = vadd.f32 %v289, %v195
    %v306 = vadd.f32 %v290, %v200
    %v307 = vadd.f32 %v291, %v205
    %v308 = vadd.f32 %v292, %v210
    %v309 = vadd.f32 %v293, %v215
    %v310 = vadd.f32 %v294, %v220
    %311 = vst [vmem:[%s3] sm:$0xff] %v295
    %312 = vst [vmem:[%s3 + $0x8] sm:$0xff] %v296
    %313 = vst [vmem:[%s3 + $0x10] sm:$0xff] %v297
    %314 = vst [vmem:[%s3 + $0x18] sm:$0xff] %v298
    %315 = vst [vmem:[%s3 + $0x20] sm:$0xff] %v299
    %316 = vst [vmem:[%s3 + $0x28] sm:$0xff] %v300
    %317 = vst [vmem:[%s3 + $0x30] sm:$0xff] %v301
    %318 = vst [vmem:[%s3 + $0x38] sm:$0xff] %v302
    %319 = vst [vmem:[%s3 + $0x40] sm:$0xff] %v303
    %320 = vst [vmem:[%s3 + $0x48] sm:$0xff] %v304
    %321 = vst [vmem:[%s3 + $0x50] sm:$0xff] %v305
    %322 = vst [vmem:[%s3 + $0x58] sm:$0xff] %v306
    %323 = vst [vmem:[%s3 + $0x60] sm:$0xff] %v307
    %324 = vst [vmem:[%s3 + $0x68] sm:$0xff] %v308
    %325 = vst [vmem:[%s3 + $0x70] sm:$0xff] %v309
    %326 = vst [vmem:[%s3 + $0x78] sm:$0xff] %v310
  $region21: #{_lightgcn_forward.6} parent=0 // pred_fallthru
    _
  // Predicated region
  $region22: #{_lightgcn_forward.6} parent=0 // pred_check
    %p327 = pneg %p223
  $region23: #{_lightgcn_forward.6} parent=0 // pred_check_branch
    %329 = sbr.rel (%p327) target = $region25
  $region24: #{_lightgcn_forward.6} parent=0 // pred_region
    %v330 = vld [vmem:[%s3] sm:$0xff]
    %v331 = vld [vmem:[%s3 + $0x8] sm:$0xff]
    %v332 = vld [vmem:[%s3 + $0x10] sm:$0xff]
    %v333 = vld [vmem:[%s3 + $0x18] sm:$0xff]
    %v334 = vld [vmem:[%s3 + $0x20] sm:$0xff]
    %v335 = vld [vmem:[%s3 + $0x28] sm:$0xff]
    %v336 = vld [vmem:[%s3 + $0x30] sm:$0xff]
    %v337 = vld [vmem:[%s3 + $0x38] sm:$0xff]
    %v338 = vld [vmem:[%s3 + $0x40] sm:$0xff]
    %v339 = vld [vmem:[%s3 + $0x48] sm:$0xff]
    %v340 = vld [vmem:[%s3 + $0x50] sm:$0xff]
    %v341 = vld [vmem:[%s3 + $0x58] sm:$0xff]
    %v342 = vld [vmem:[%s3 + $0x60] sm:$0xff]
    %v343 = vld [vmem:[%s3 + $0x68] sm:$0xff]
    %v344 = vld [vmem:[%s3 + $0x70] sm:$0xff]
    %v345 = vld [vmem:[%s3 + $0x78] sm:$0xff]
    %v346 = vmul.f32 %v330, 0.33333334
    %v347 = vmul.f32 %v331, 0.33333334
    %v348 = vmul.f32 %v332, 0.33333334
    %v349 = vmul.f32 %v333, 0.33333334
    %v350 = vmul.f32 %v334, 0.33333334
    %v351 = vmul.f32 %v335, 0.33333334
    %v352 = vmul.f32 %v336, 0.33333334
    %v353 = vmul.f32 %v337, 0.33333334
    %v354 = vmul.f32 %v338, 0.33333334
    %v355 = vmul.f32 %v339, 0.33333334
    %v356 = vmul.f32 %v340, 0.33333334
    %v357 = vmul.f32 %v341, 0.33333334
    %v358 = vmul.f32 %v342, 0.33333334
    %v359 = vmul.f32 %v343, 0.33333334
    %v360 = vmul.f32 %v344, 0.33333334
    %v361 = vmul.f32 %v345, 0.33333334
    %362 = vst [vmem:[%s3] sm:$0xff] %v346
    %363 = vst [vmem:[%s3 + $0x8] sm:$0xff] %v347
    %364 = vst [vmem:[%s3 + $0x10] sm:$0xff] %v348
    %365 = vst [vmem:[%s3 + $0x18] sm:$0xff] %v349
    %366 = vst [vmem:[%s3 + $0x20] sm:$0xff] %v350
    %367 = vst [vmem:[%s3 + $0x28] sm:$0xff] %v351
    %368 = vst [vmem:[%s3 + $0x30] sm:$0xff] %v352
    %369 = vst [vmem:[%s3 + $0x38] sm:$0xff] %v353
    %370 = vst [vmem:[%s3 + $0x40] sm:$0xff] %v354
    %371 = vst [vmem:[%s3 + $0x48] sm:$0xff] %v355
    %372 = vst [vmem:[%s3 + $0x50] sm:$0xff] %v356
    %373 = vst [vmem:[%s3 + $0x58] sm:$0xff] %v357
    %374 = vst [vmem:[%s3 + $0x60] sm:$0xff] %v358
    %375 = vst [vmem:[%s3 + $0x68] sm:$0xff] %v359
    %376 = vst [vmem:[%s3 + $0x70] sm:$0xff] %v360
    %377 = vst [vmem:[%s3 + $0x78] sm:$0xff] %v361
  $region25: #{_lightgcn_forward.6} parent=0 // pred_fallthru
    _
  // Predicated region
  $region26: #{_lightgcn_forward.6} parent=0 // pred_check
    _
  $region27: #{_lightgcn_forward.6} parent=0 // pred_check_branch
    %379 = sbr.rel (0) target = $region29
  $region28: #{_lightgcn_forward.6} parent=0 // pred_region
    _
  $region29: #{_lightgcn_forward.6} parent=0 // pred_fallthru
    _
  // Predicated region
  $region30: #{_lightgcn_forward.6} parent=0 // pred_check
    _
  $region31: #{_lightgcn_forward.6} parent=0 // pred_check_branch
    %381 = sbr.rel (0) target = $region33
  $region32: #{_lightgcn_forward.6} parent=0 // pred_region
    _
  $region33: #{_lightgcn_forward.6} parent=0 // pred_fallthru
    _

// kernel: _lightgcn_forward.5
$region0: #{_lightgcn_forward.5}
  #allocation0 [shape = 'u32[]', space=smem, size = 0x4, offset = 0x4, fixed_abs, tag = 'smem constant byte address 0x4 - core index']
  #allocation1 [shape = 'u32[144,128]{1,0:T(1,128)}', space=vmem, size = 0x12000, scoped, tag = 'internal scratch']
  #allocation2 [shape = 'f32[256,128]{1,0:T(8,128)}', space=vmem, size = 0x20000, scoped, tag = 'scratch operand']
  %s0 = inlined_call_operand.vmem [shape: f32[256,128], index: 0, kind: input, shape index: {}]
  %s1 = inlined_call_operand.vmem [shape: f32[128,128], index: 1, kind: input, shape index: {}]
  %s2 = inlined_call_operand.vmem [shape: f32[256,128], index: 2, kind: input, shape index: {}, may-alias: {2,4}]
  %s3 = inlined_call_operand.vmem [shape: f32[256,128], index: 3, kind: output, shape index: {0}]
  %s4 = inlined_call_operand.vmem [shape: f32[256,128], index: 4, kind: output, shape index: {1}, may-alias: {2,4}]
  %5 = xla_tuple %s3, %s4
  %s6 = sld [smem:[#allocation0]]
  $region42: #{_lightgcn_forward.5} parent=0
    _
  %s8 = ssub.s32 1, %s6
  %s9 = scalar_select 0, %s8, %s6
  // Predicated region
  $region2: #{_lightgcn_forward.5} parent=0 // pred_check
    _
  $region3: #{_lightgcn_forward.5} parent=0 // pred_check_branch
    %11 = sbr.rel (0) target = $region5
  $region4: #{_lightgcn_forward.5} parent=0 // pred_region
    _
  $region5: #{_lightgcn_forward.5} parent=0 // pred_fallthru
    _
  // Predicated region
  $region6: #{_lightgcn_forward.5} parent=0 // pred_check
    _
  $region7: #{_lightgcn_forward.5} parent=0 // pred_check_branch
    %13 = sbr.rel (0) target = $region9
  $region8: #{_lightgcn_forward.5} parent=0 // pred_region
    _
  $region9: #{_lightgcn_forward.5} parent=0 // pred_fallthru
    _
  // Predicated region
  $region10: #{_lightgcn_forward.5} parent=0 // pred_check
    _
  $region11: #{_lightgcn_forward.5} parent=0 // pred_check_branch
    %15 = sbr.rel (0) target = $region13
  $region12: #{_lightgcn_forward.5} parent=0 // pred_region
    _
  $region13: #{_lightgcn_forward.5} parent=0 // pred_fallthru
    _
  %v16 = vld [vmem:[%s0] sm:$0xff]
  %v17 = vld [vmem:[%s0 + $0x8] sm:$0xff]
  %v18 = vld [vmem:[%s0 + $0x10] sm:$0xff]
  %v19 = vld [vmem:[%s0 + $0x18] sm:$0xff]
  %v20 = vld [vmem:[%s0 + $0x20] sm:$0xff]
  %v21 = vld [vmem:[%s0 + $0x28] sm:$0xff]
  %v22 = vld [vmem:[%s0 + $0x30] sm:$0xff]
  %v23 = vld [vmem:[%s0 + $0x38] sm:$0xff]
  %v24 = vld [vmem:[%s0 + $0x40] sm:$0xff]
  %v25 = vld [vmem:[%s0 + $0x48] sm:$0xff]
  %v26 = vld [vmem:[%s0 + $0x50] sm:$0xff]
  %v27 = vld [vmem:[%s0 + $0x58] sm:$0xff]
  %v28 = vld [vmem:[%s0 + $0x60] sm:$0xff]
  %v29 = vld [vmem:[%s0 + $0x68] sm:$0xff]
  %v30 = vld [vmem:[%s0 + $0x70] sm:$0xff]
  %v31 = vld [vmem:[%s0 + $0x78] sm:$0xff]
  %v32 = vld [vmem:[%s0 + $0x80] sm:$0xff]
  %v33 = vld [vmem:[%s0 + $0x88] sm:$0xff]
  %v34 = vld [vmem:[%s0 + $0x90] sm:$0xff]
  %v35 = vld [vmem:[%s0 + $0x98] sm:$0xff]
  %v36 = vld [vmem:[%s0 + $0xa0] sm:$0xff]
  %v37 = vld [vmem:[%s0 + $0xa8] sm:$0xff]
  %v38 = vld [vmem:[%s0 + $0xb0] sm:$0xff]
  %v39 = vld [vmem:[%s0 + $0xb8] sm:$0xff]
  %v40 = vld [vmem:[%s0 + $0xc0] sm:$0xff]
  %v41 = vld [vmem:[%s0 + $0xc8] sm:$0xff]
  %v42 = vld [vmem:[%s0 + $0xd0] sm:$0xff]
  %v43 = vld [vmem:[%s0 + $0xd8] sm:$0xff]
  %v44 = vld [vmem:[%s0 + $0xe0] sm:$0xff]
  %v45 = vld [vmem:[%s0 + $0xe8] sm:$0xff]
  %v46 = vld [vmem:[%s0 + $0xf0] sm:$0xff]
  %v47 = vld [vmem:[%s0 + $0xf8] sm:$0xff]
  %v48 = vld [vmem:[%s1] sm:$0xff]
  %v49 = vld [vmem:[%s1 + $0x8] sm:$0xff]
  %v50 = vld [vmem:[%s1 + $0x10] sm:$0xff]
  %v51 = vld [vmem:[%s1 + $0x18] sm:$0xff]
  %v52 = vld [vmem:[%s1 + $0x20] sm:$0xff]
  %v53 = vld [vmem:[%s1 + $0x28] sm:$0xff]
  %v54 = vld [vmem:[%s1 + $0x30] sm:$0xff]
  %v55 = vld [vmem:[%s1 + $0x38] sm:$0xff]
  %v56 = vld [vmem:[%s1 + $0x40] sm:$0xff]
  %v57 = vld [vmem:[%s1 + $0x48] sm:$0xff]
  %v58 = vld [vmem:[%s1 + $0x50] sm:$0xff]
  %v59 = vld [vmem:[%s1 + $0x58] sm:$0xff]
  %v60 = vld [vmem:[%s1 + $0x60] sm:$0xff]
  %v61 = vld [vmem:[%s1 + $0x68] sm:$0xff]
  %v62 = vld [vmem:[%s1 + $0x70] sm:$0xff]
  %v63 = vld [vmem:[%s1 + $0x78] sm:$0xff]
  %64 = vmatprep.subr.mxu0 0.0
  %65 = vmatpush1.msra.mxu0 %v48
  %66 = vmatprep.subr.mxu0 0.0
  %67 = vmatpush1.msra.mxu0 %v49
  %68 = vmatprep.subr.mxu0 0.0
  %69 = vmatpush1.msra.mxu0 %v50
  %70 = vmatprep.subr.mxu0 0.0
  %71 = vmatpush1.msra.mxu0 %v51
  %72 = vmatprep.subr.mxu0 0.0
  %73 = vmatpush1.msra.mxu0 %v52
  %74 = vmatprep.subr.mxu0 0.0
  %75 = vmatpush1.msra.mxu0 %v53
  %76 = vmatprep.subr.mxu0 0.0
  %77 = vmatpush1.msra.mxu0 %v54
  %78 = vmatprep.subr.mxu0 0.0
  %79 = vmatpush1.msra.mxu0 %v55
  %80 = vmatprep.subr.mxu0 0.0
  %81 = vmatpush1.msra.mxu0 %v56
  %82 = vmatprep.subr.mxu0 0.0
  %83 = vmatpush1.msra.mxu0 %v57
  %84 = vmatprep.subr.mxu0 0.0
  %85 = vmatpush1.msra.mxu0 %v58
  %86 = vmatprep.subr.mxu0 0.0
  %87 = vmatpush1.msra.mxu0 %v59
  %88 = vmatprep.subr.mxu0 0.0
  %89 = vmatpush1.msra.mxu0 %v60
  %90 = vmatprep.subr.mxu0 0.0
  %91 = vmatpush1.msra.mxu0 %v61
  %92 = vmatprep.subr.mxu0 0.0
  %93 = vmatpush1.msra.mxu0 %v62
  %94 = vmatprep.subr.mxu0 0.0
  %95 = vmatpush1.msra.mxu0 %v63
  %96 = vmatprep.subr.mxu0 0.0
  %97 = vmatpush1.msra.mxu0 0.0
  %98 = vmatprep.subr.mxu0 0.0
  %99 = vmatpush1.msra.mxu0 0.0
  %100 = vmatprep.subr.mxu0 0.0
  %101 = vmatpush1.msra.mxu0 0.0
  %102 = vmatprep.subr.mxu0 0.0
  %103 = vmatpush1.msra.mxu0 0.0
  %104 = vmatprep.subr.mxu0 0.0
  %105 = vmatpush1.msra.mxu0 0.0
  %106 = vmatprep.subr.mxu0 0.0
  %107 = vmatpush1.msra.mxu0 0.0
  %108 = vmatprep.subr.mxu0 0.0
  %109 = vmatpush1.msra.mxu0 0.0
  %110 = vmatprep.subr.mxu0 0.0
  %111 = vmatpush1.msra.mxu0 0.0
  %112 = vmatprep.subr.mxu0 0.0
  %113 = vmatpush1.msra.mxu0 0.0
  %114 = vmatprep.subr.mxu0 0.0
  %115 = vmatpush1.msra.mxu0 0.0
  %116 = vmatprep.subr.mxu0 0.0
  %117 = vmatpush1.msra.mxu0 0.0
  %118 = vmatprep.subr.mxu0 0.0
  %119 = vmatpush1.msra.mxu0 0.0
  %120 = vmatprep.subr.mxu0 0.0
  %121 = vmatpush1.msra.mxu0 0.0
  %122 = vmatprep.subr.mxu0 0.0
  %123 = vmatpush1.msra.mxu0 0.0
  %124 = vmatprep.subr.mxu0 0.0
  %125 = vmatpush1.msra.mxu0 0.0
  %126 = vmatprep.subr.mxu0 0.0
  %127 = vmatpush1.msra.mxu0 0.0
  %128 = vmatprep.mubr.f32.mxu0 0.0
  %129 = vmatmul.mubr.f32.gmra.mrb[0].mxu0 %v16
  %v130 = vpop.f32.mrb[0].mxu0
  %v131 = vadd.f32 0.0, %v130
  %v132 = vpop.f32.mrb[0].mxu0
  %133 = vmatprep.mubr.f32.mxu0 0.0
  %134 = vmatmul.mubr.f32.gmra.mrb[0].mxu0 %v17
  %v135 = vpop.f32.mrb[0].mxu0
  %v136 = vadd.f32 0.0, %v135
  %v137 = vpop.f32.mrb[0].mxu0
  %138 = vmatprep.mubr.f32.mxu0 0.0
  %139 = vmatmul.mubr.f32.gmra.mrb[0].mxu0 %v18
  %v140 = vpop.f32.mrb[0].mxu0
  %v141 = vadd.f32 0.0, %v140
  %v142 = vpop.f32.mrb[0].mxu0
  %143 = vmatprep.mubr.f32.mxu0 0.0
  %144 = vmatmul.mubr.f32.gmra.mrb[0].mxu0 %v19
  %v145 = vpop.f32.mrb[0].mxu0
  %v146 = vadd.f32 0.0, %v145
  %v147 = vpop.f32.mrb[0].mxu0
  %148 = vmatprep.mubr.f32.mxu0 0.0
  %149 = vmatmul.mubr.f32.gmra.mrb[0].mxu0 %v20
  %v150 = vpop.f32.mrb[0].mxu0
  %v151 = vadd.f32 0.0, %v150
  %v152 = vpop.f32.mrb[0].mxu0
  %153 = vmatprep.mubr.f32.mxu0 0.0
  %154 = vmatmul.mubr.f32.gmra.mrb[0].mxu0 %v21
  %v155 = vpop.f32.mrb[0].mxu0
  %v156 = vadd.f32 0.0, %v155
  %v157 = vpop.f32.mrb[0].mxu0
  %158 = vmatprep.mubr.f32.mxu0 0.0
  %159 = vmatmul.mubr.f32.gmra.mrb[0].mxu0 %v22
  %v160 = vpop.f32.mrb[0].mxu0
  %v161 = vadd.f32 0.0, %v160
  %v162 = vpop.f32.mrb[0].mxu0
  %163 = vmatprep.mubr.f32.mxu0 0.0
  %164 = vmatmul.mubr.f32.gmra.mrb[0].mxu0 %v23
  %v165 = vpop.f32.mrb[0].mxu0
  %v166 = vadd.f32 0.0, %v165
  %v167 = vpop.f32.mrb[0].mxu0
  %168 = vmatprep.mubr.f32.mxu0 0.0
  %169 = vmatmul.mubr.f32.gmra.mrb[0].mxu0 %v24
  %v170 = vpop.f32.mrb[0].mxu0
  %v171 = vadd.f32 0.0, %v170
  %v172 = vpop.f32.mrb[0].mxu0
  %173 = vmatprep.mubr.f32.mxu0 0.0
  %174 = vmatmul.mubr.f32.gmra.mrb[0].mxu0 %v25
  %v175 = vpop.f32.mrb[0].mxu0
  %v176 = vadd.f32 0.0, %v175
  %v177 = vpop.f32.mrb[0].mxu0
  %178 = vmatprep.mubr.f32.mxu0 0.0
  %179 = vmatmul.mubr.f32.gmra.mrb[0].mxu0 %v26
  %v180 = vpop.f32.mrb[0].mxu0
  %v181 = vadd.f32 0.0, %v180
  %v182 = vpop.f32.mrb[0].mxu0
  %183 = vmatprep.mubr.f32.mxu0 0.0
  %184 = vmatmul.mubr.f32.gmra.mrb[0].mxu0 %v27
  %v185 = vpop.f32.mrb[0].mxu0
  %v186 = vadd.f32 0.0, %v185
  %v187 = vpop.f32.mrb[0].mxu0
  %188 = vmatprep.mubr.f32.mxu0 0.0
  %189 = vmatmul.mubr.f32.gmra.mrb[0].mxu0 %v28
  %v190 = vpop.f32.mrb[0].mxu0
  %v191 = vadd.f32 0.0, %v190
  %v192 = vpop.f32.mrb[0].mxu0
  %193 = vmatprep.mubr.f32.mxu0 0.0
  %194 = vmatmul.mubr.f32.gmra.mrb[0].mxu0 %v29
  %v195 = vpop.f32.mrb[0].mxu0
  %v196 = vadd.f32 0.0, %v195
  %v197 = vpop.f32.mrb[0].mxu0
  %198 = vmatprep.mubr.f32.mxu0 0.0
  %199 = vmatmul.mubr.f32.gmra.mrb[0].mxu0 %v30
  %v200 = vpop.f32.mrb[0].mxu0
  %v201 = vadd.f32 0.0, %v200
  %v202 = vpop.f32.mrb[0].mxu0
  %203 = vmatprep.mubr.f32.mxu0 0.0
  %204 = vmatmul.mubr.f32.gmra.mrb[0].mxu0 %v31
  %v205 = vpop.f32.mrb[0].mxu0
  %v206 = vadd.f32 0.0, %v205
  %v207 = vpop.f32.mrb[0].mxu0
  %208 = vmatprep.mubr.f32.mxu0 0.0
  %209 = vmatmul.mubr.f32.gmra.mrb[0].mxu0 %v32
  %v210 = vpop.f32.mrb[0].mxu0
  %v211 = vadd.f32 0.0, %v210
  %v212 = vpop.f32.mrb[0].mxu0
  %213 = vmatprep.mubr.f32.mxu0 0.0
  %214 = vmatmul.mubr.f32.gmra.mrb[0].mxu0 %v33
  %v215 = vpop.f32.mrb[0].mxu0
  %v216 = vadd.f32 0.0, %v215
  %v217 = vpop.f32.mrb[0].mxu0
  %218 = vmatprep.mubr.f32.mxu0 0.0
  %219 = vmatmul.mubr.f32.gmra.mrb[0].mxu0 %v34
  %v220 = vpop.f32.mrb[0].mxu0
  %v221 = vadd.f32 0.0, %v220
  %v222 = vpop.f32.mrb[0].mxu0
  %223 = vmatprep.mubr.f32.mxu0 0.0
  %224 = vmatmul.mubr.f32.gmra.mrb[0].mxu0 %v35
  %v225 = vpop.f32.mrb[0].mxu0
  %v226 = vadd.f32 0.0, %v225
  %v227 = vpop.f32.mrb[0].mxu0
  %228 = vmatprep.mubr.f32.mxu0 0.0
  %229 = vmatmul.mubr.f32.gmra.mrb[0].mxu0 %v36
  %v230 = vpop.f32.mrb[0].mxu0
  %v231 = vadd.f32 0.0, %v230
  %v232 = vpop.f32.mrb[0].mxu0
  %233 = vmatprep.mubr.f32.mxu0 0.0
  %234 = vmatmul.mubr.f32.gmra.mrb[0].mxu0 %v37
  %v235 = vpop.f32.mrb[0].mxu0
  %v236 = vadd.f32 0.0, %v235
  %v237 = vpop.f32.mrb[0].mxu0
  %238 = vmatprep.mubr.f32.mxu0 0.0
  %239 = vmatmul.mubr.f32.gmra.mrb[0].mxu0 %v38
  %v240 = vpop.f32.mrb[0].mxu0
  %v241 = vadd.f32 0.0, %v240
  %v242 = vpop.f32.mrb[0].mxu0
  %243 = vmatprep.mubr.f32.mxu0 0.0
  %244 = vmatmul.mubr.f32.gmra.mrb[0].mxu0 %v39
  %v245 = vpop.f32.mrb[0].mxu0
  %v246 = vadd.f32 0.0, %v245
  %v247 = vpop.f32.mrb[0].mxu0
  %248 = vmatprep.mubr.f32.mxu0 0.0
  %249 = vmatmul.mubr.f32.gmra.mrb[0].mxu0 %v40
  %v250 = vpop.f32.mrb[0].mxu0
  %v251 = vadd.f32 0.0, %v250
  %v252 = vpop.f32.mrb[0].mxu0
  %253 = vmatprep.mubr.f32.mxu0 0.0
  %254 = vmatmul.mubr.f32.gmra.mrb[0].mxu0 %v41
  %v255 = vpop.f32.mrb[0].mxu0
  %v256 = vadd.f32 0.0, %v255
  %v257 = vpop.f32.mrb[0].mxu0
  %258 = vmatprep.mubr.f32.mxu0 0.0
  %259 = vmatmul.mubr.f32.gmra.mrb[0].mxu0 %v42
  %v260 = vpop.f32.mrb[0].mxu0
  %v261 = vadd.f32 0.0, %v260
  %v262 = vpop.f32.mrb[0].mxu0
  %263 = vmatprep.mubr.f32.mxu0 0.0
  %264 = vmatmul.mubr.f32.gmra.mrb[0].mxu0 %v43
  %v265 = vpop.f32.mrb[0].mxu0
  %v266 = vadd.f32 0.0, %v265
  %v267 = vpop.f32.mrb[0].mxu0
  %268 = vmatprep.mubr.f32.mxu0 0.0
  %269 = vmatmul.mubr.f32.gmra.mrb[0].mxu0 %v44
  %v270 = vpop.f32.mrb[0].mxu0
  %v271 = vadd.f32 0.0, %v270
  %v272 = vpop.f32.mrb[0].mxu0
  %273 = vmatprep.mubr.f32.mxu0 0.0
  %274 = vmatmul.mubr.f32.gmra.mrb[0].mxu0 %v45
  %v275 = vpop.f32.mrb[0].mxu0
  %v276 = vadd.f32 0.0, %v275
  %v277 = vpop.f32.mrb[0].mxu0
  %278 = vmatprep.mubr.f32.mxu0 0.0
  %279 = vmatmul.mubr.f32.gmra.mrb[0].mxu0 %v46
  %v280 = vpop.f32.mrb[0].mxu0
  %v281 = vadd.f32 0.0, %v280
  %v282 = vpop.f32.mrb[0].mxu0
  %283 = vmatprep.mubr.f32.mxu0 0.0
  %284 = vmatmul.mubr.f32.gmra.mrb[0].mxu0 %v47
  %v285 = vpop.f32.mrb[0].mxu0
  %v286 = vadd.f32 0.0, %v285
  %v287 = vpop.f32.mrb[0].mxu0
  %288 = vdwg.mxu0
  %p289 = scmp.eq.s32.totalorder 0, 0
  // Predicated region
  $region14: #{_lightgcn_forward.5} parent=0 // pred_check
    %p290 = pneg %p289
  $region15: #{_lightgcn_forward.5} parent=0 // pred_check_branch
    %292 = sbr.rel (%p290) target = $region17
  $region16: #{_lightgcn_forward.5} parent=0 // pred_region
    %293 = vst [vmem:[#allocation2] sm:$0xff] %v131
    %294 = vst [vmem:[#allocation2 + $0x8] sm:$0xff] %v136
    %295 = vst [vmem:[#allocation2 + $0x10] sm:$0xff] %v141
    %296 = vst [vmem:[#allocation2 + $0x18] sm:$0xff] %v146
    %297 = vst [vmem:[#allocation2 + $0x20] sm:$0xff] %v151
    %298 = vst [vmem:[#allocation2 + $0x28] sm:$0xff] %v156
    %299 = vst [vmem:[#allocation2 + $0x30] sm:$0xff] %v161
    %300 = vst [vmem:[#allocation2 + $0x38] sm:$0xff] %v166
    %301 = vst [vmem:[#allocation2 + $0x40] sm:$0xff] %v171
    %302 = vst [vmem:[#allocation2 + $0x48] sm:$0xff] %v176
    %303 = vst [vmem:[#allocation2 + $0x50] sm:$0xff] %v181
    %304 = vst [vmem:[#allocation2 + $0x58] sm:$0xff] %v186
    %305 = vst [vmem:[#allocation2 + $0x60] sm:$0xff] %v191
    %306 = vst [vmem:[#allocation2 + $0x68] sm:$0xff] %v196
    %307 = vst [vmem:[#allocation2 + $0x70] sm:$0xff] %v201
    %308 = vst [vmem:[#allocation2 + $0x78] sm:$0xff] %v206
    %309 = vst [vmem:[#allocation2 + $0x80] sm:$0xff] %v211
    %310 = vst [vmem:[#allocation2 + $0x88] sm:$0xff] %v216
    %311 = vst [vmem:[#allocation2 + $0x90] sm:$0xff] %v221
    %312 = vst [vmem:[#allocation2 + $0x98] sm:$0xff] %v226
    %313 = vst [vmem:[#allocation2 + $0xa0] sm:$0xff] %v231
    %314 = vst [vmem:[#allocation2 + $0xa8] sm:$0xff] %v236
    %315 = vst [vmem:[#allocation2 + $0xb0] sm:$0xff] %v241
    %316 = vst [vmem:[#allocation2 + $0xb8] sm:$0xff] %v246
    %317 = vst [vmem:[#allocation2 + $0xc0] sm:$0xff] %v251
    %318 = vst [vmem:[#allocation2 + $0xc8] sm:$0xff] %v256
    %319 = vst [vmem:[#allocation2 + $0xd0] sm:$0xff] %v261
    %320 = vst [vmem:[#allocation2 + $0xd8] sm:$0xff] %v266
    %321 = vst [vmem:[#allocation2 + $0xe0] sm:$0xff] %v271
    %322 = vst [vmem:[#allocation2 + $0xe8] sm:$0xff] %v276
    %323 = vst [vmem:[#allocation2 + $0xf0] sm:$0xff] %v281
    %324 = vst [vmem:[#allocation2 + $0xf8] sm:$0xff] %v286
  $region17: #{_lightgcn_forward.5} parent=0 // pred_fallthru
    _
  %p325 = scmp.gt.s32.totalorder 0, 0
  // Predicated region
  $region18: #{_lightgcn_forward.5} parent=0 // pred_check
    %p326 = pneg %p325
  $region19: #{_lightgcn_forward.5} parent=0 // pred_check_branch
    %328 = sbr.rel (%p326) target = $region21
  $region20: #{_lightgcn_forward.5} parent=0 // pred_region
    %v329 = vld [vmem:[#allocation2] sm:$0xff]
    %v330 = vld [vmem:[#allocation2 + $0x8] sm:$0xff]
    %v331 = vld [vmem:[#allocation2 + $0x10] sm:$0xff]
    %v332 = vld [vmem:[#allocation2 + $0x18] sm:$0xff]
    %v333 = vld [vmem:[#allocation2 + $0x20] sm:$0xff]
    %v334 = vld [vmem:[#allocation2 + $0x28] sm:$0xff]
    %v335 = vld [vmem:[#allocation2 + $0x30] sm:$0xff]
    %v336 = vld [vmem:[#allocation2 + $0x38] sm:$0xff]
    %v337 = vld [vmem:[#allocation2 + $0x40] sm:$0xff]
    %v338 = vld [vmem:[#allocation2 + $0x48] sm:$0xff]
    %v339 = vld [vmem:[#allocation2 + $0x50] sm:$0xff]
    %v340 = vld [vmem:[#allocation2 + $0x58] sm:$0xff]
    %v341 = vld [vmem:[#allocation2 + $0x60] sm:$0xff]
    %v342 = vld [vmem:[#allocation2 + $0x68] sm:$0xff]
    %v343 = vld [vmem:[#allocation2 + $0x70] sm:$0xff]
    %v344 = vld [vmem:[#allocation2 + $0x78] sm:$0xff]
    %v345 = vld [vmem:[#allocation2 + $0x80] sm:$0xff]
    %v346 = vld [vmem:[#allocation2 + $0x88] sm:$0xff]
    %v347 = vld [vmem:[#allocation2 + $0x90] sm:$0xff]
    %v348 = vld [vmem:[#allocation2 + $0x98] sm:$0xff]
    %v349 = vld [vmem:[#allocation2 + $0xa0] sm:$0xff]
    %v350 = vld [vmem:[#allocation2 + $0xa8] sm:$0xff]
    %v351 = vld [vmem:[#allocation2 + $0xb0] sm:$0xff]
    %v352 = vld [vmem:[#allocation2 + $0xb8] sm:$0xff]
    %v353 = vld [vmem:[#allocation2 + $0xc0] sm:$0xff]
    %v354 = vld [vmem:[#allocation2 + $0xc8] sm:$0xff]
    %v355 = vld [vmem:[#allocation2 + $0xd0] sm:$0xff]
    %v356 = vld [vmem:[#allocation2 + $0xd8] sm:$0xff]
    %v357 = vld [vmem:[#allocation2 + $0xe0] sm:$0xff]
    %v358 = vld [vmem:[#allocation2 + $0xe8] sm:$0xff]
    %v359 = vld [vmem:[#allocation2 + $0xf0] sm:$0xff]
    %v360 = vld [vmem:[#allocation2 + $0xf8] sm:$0xff]
    %v361 = vadd.f32 %v329, %v131
    %v362 = vadd.f32 %v330, %v136
    %v363 = vadd.f32 %v331, %v141
    %v364 = vadd.f32 %v332, %v146
    %v365 = vadd.f32 %v333, %v151
    %v366 = vadd.f32 %v334, %v156
    %v367 = vadd.f32 %v335, %v161
    %v368 = vadd.f32 %v336, %v166
    %v369 = vadd.f32 %v337, %v171
    %v370 = vadd.f32 %v338, %v176
    %v371 = vadd.f32 %v339, %v181
    %v372 = vadd.f32 %v340, %v186
    %v373 = vadd.f32 %v341, %v191
    %v374 = vadd.f32 %v342, %v196
    %v375 = vadd.f32 %v343, %v201
    %v376 = vadd.f32 %v344, %v206
    %v377 = vadd.f32 %v345, %v211
    %v378 = vadd.f32 %v346, %v216
    %v379 = vadd.f32 %v347, %v221
    %v380 = vadd.f32 %v348, %v226
    %v381 = vadd.f32 %v349, %v231
    %v382 = vadd.f32 %v350, %v236
    %v383 = vadd.f32 %v351, %v241
    %v384 = vadd.f32 %v352, %v246
    %v385 = vadd.f32 %v353, %v251
    %v386 = vadd.f32 %v354, %v256
    %v387 = vadd.f32 %v355, %v261
    %v388 = vadd.f32 %v356, %v266
    %v389 = vadd.f32 %v357, %v271
    %v390 = vadd.f32 %v358, %v276
    %v391 = vadd.f32 %v359, %v281
    %v392 = vadd.f32 %v360, %v286
    %393 = vst [vmem:[#allocation2] sm:$0xff] %v361
    %394 = vst [vmem:[#allocation2 + $0x8] sm:$0xff] %v362
    %395 = vst [vmem:[#allocation2 + $0x10] sm:$0xff] %v363
    %396 = vst [vmem:[#allocation2 + $0x18] sm:$0xff] %v364
    %397 = vst [vmem:[#allocation2 + $0x20] sm:$0xff] %v365
    %398 = vst [vmem:[#allocation2 + $0x28] sm:$0xff] %v366
    %399 = vst [vmem:[#allocation2 + $0x30] sm:$0xff] %v367
    %400 = vst [vmem:[#allocation2 + $0x38] sm:$0xff] %v368
    %401 = vst [vmem:[#allocation2 + $0x40] sm:$0xff] %v369
    %402 = vst [vmem:[#allocation2 + $0x48] sm:$0xff] %v370
    %403 = vst [vmem:[#allocation2 + $0x50] sm:$0xff] %v371
    %404 = vst [vmem:[#allocation2 + $0x58] sm:$0xff] %v372
    %405 = vst [vmem:[#allocation2 + $0x60] sm:$0xff] %v373
    %406 = vst [vmem:[#allocation2 + $0x68] sm:$0xff] %v374
    %407 = vst [vmem:[#allocation2 + $0x70] sm:$0xff] %v375
    %408 = vst [vmem:[#allocation2 + $0x78] sm:$0xff] %v376
    %409 = vst [vmem:[#allocation2 + $0x80] sm:$0xff] %v377
    %410 = vst [vmem:[#allocation2 + $0x88] sm:$0xff] %v378
    %411 = vst [vmem:[#allocation2 + $0x90] sm:$0xff] %v379
    %412 = vst [vmem:[#allocation2 + $0x98] sm:$0xff] %v380
    %413 = vst [vmem:[#allocation2 + $0xa0] sm:$0xff] %v381
    %414 = vst [vmem:[#allocation2 + $0xa8] sm:$0xff] %v382
    %415 = vst [vmem:[#allocation2 + $0xb0] sm:$0xff] %v383
    %416 = vst [vmem:[#allocation2 + $0xb8] sm:$0xff] %v384
    %417 = vst [vmem:[#allocation2 + $0xc0] sm:$0xff] %v385
    %418 = vst [vmem:[#allocation2 + $0xc8] sm:$0xff] %v386
    %419 = vst [vmem:[#allocation2 + $0xd0] sm:$0xff] %v387
    %420 = vst [vmem:[#allocation2 + $0xd8] sm:$0xff] %v388
    %421 = vst [vmem:[#allocation2 + $0xe0] sm:$0xff] %v389
    %422 = vst [vmem:[#allocation2 + $0xe8] sm:$0xff] %v390
    %423 = vst [vmem:[#allocation2 + $0xf0] sm:$0xff] %v391
    %424 = vst [vmem:[#allocation2 + $0xf8] sm:$0xff] %v392
  $region21: #{_lightgcn_forward.5} parent=0 // pred_fallthru
    _
  // Predicated region
  $region22: #{_lightgcn_forward.5} parent=0 // pred_check
    %p425 = pneg %p289
  $region23: #{_lightgcn_forward.5} parent=0 // pred_check_branch
    %427 = sbr.rel (%p425) target = $region25
  $region24: #{_lightgcn_forward.5} parent=0 // pred_region
    %v428 = vld [vmem:[#allocation2] sm:$0xff]
    %v429 = vld [vmem:[#allocation2 + $0x8] sm:$0xff]
    %v430 = vld [vmem:[#allocation2 + $0x10] sm:$0xff]
    %v431 = vld [vmem:[#allocation2 + $0x18] sm:$0xff]
    %v432 = vld [vmem:[#allocation2 + $0x20] sm:$0xff]
    %v433 = vld [vmem:[#allocation2 + $0x28] sm:$0xff]
    %v434 = vld [vmem:[#allocation2 + $0x30] sm:$0xff]
    %v435 = vld [vmem:[#allocation2 + $0x38] sm:$0xff]
    %v436 = vld [vmem:[#allocation2 + $0x40] sm:$0xff]
    %v437 = vld [vmem:[#allocation2 + $0x48] sm:$0xff]
    %v438 = vld [vmem:[#allocation2 + $0x50] sm:$0xff]
    %v439 = vld [vmem:[#allocation2 + $0x58] sm:$0xff]
    %v440 = vld [vmem:[#allocation2 + $0x60] sm:$0xff]
    %v441 = vld [vmem:[#allocation2 + $0x68] sm:$0xff]
    %v442 = vld [vmem:[#allocation2 + $0x70] sm:$0xff]
    %v443 = vld [vmem:[#allocation2 + $0x78] sm:$0xff]
    %v444 = vld [vmem:[#allocation2 + $0x80] sm:$0xff]
    %v445 = vld [vmem:[#allocation2 + $0x88] sm:$0xff]
    %v446 = vld [vmem:[#allocation2 + $0x90] sm:$0xff]
    %v447 = vld [vmem:[#allocation2 + $0x98] sm:$0xff]
    %v448 = vld [vmem:[#allocation2 + $0xa0] sm:$0xff]
    %v449 = vld [vmem:[#allocation2 + $0xa8] sm:$0xff]
    %v450 = vld [vmem:[#allocation2 + $0xb0] sm:$0xff]
    %v451 = vld [vmem:[#allocation2 + $0xb8] sm:$0xff]
    %v452 = vld [vmem:[#allocation2 + $0xc0] sm:$0xff]
    %v453 = vld [vmem:[#allocation2 + $0xc8] sm:$0xff]
    %v454 = vld [vmem:[#allocation2 + $0xd0] sm:$0xff]
    %v455 = vld [vmem:[#allocation2 + $0xd8] sm:$0xff]
    %v456 = vld [vmem:[#allocation2 + $0xe0] sm:$0xff]
    %v457 = vld [vmem:[#allocation2 + $0xe8] sm:$0xff]
    %v458 = vld [vmem:[#allocation2 + $0xf0] sm:$0xff]
    %v459 = vld [vmem:[#allocation2 + $0xf8] sm:$0xff]
    %460 = vst [vmem:[%s3] sm:$0xff] %v428
    %461 = vst [vmem:[%s3 + $0x8] sm:$0xff] %v429
    %462 = vst [vmem:[%s3 + $0x10] sm:$0xff] %v430
    %463 = vst [vmem:[%s3 + $0x18] sm:$0xff] %v431
    %464 = vst [vmem:[%s3 + $0x20] sm:$0xff] %v432
    %465 = vst [vmem:[%s3 + $0x28] sm:$0xff] %v433
    %466 = vst [vmem:[%s3 + $0x30] sm:$0xff] %v434
    %467 = vst [vmem:[%s3 + $0x38] sm:$0xff] %v435
    %468 = vst [vmem:[%s3 + $0x40] sm:$0xff] %v436
    %469 = vst [vmem:[%s3 + $0x48] sm:$0xff] %v437
    %470 = vst [vmem:[%s3 + $0x50] sm:$0xff] %v438
    %471 = vst [vmem:[%s3 + $0x58] sm:$0xff] %v439
    %472 = vst [vmem:[%s3 + $0x60] sm:$0xff] %v440
    %473 = vst [vmem:[%s3 + $0x68] sm:$0xff] %v441
    %474 = vst [vmem:[%s3 + $0x70] sm:$0xff] %v442
    %475 = vst [vmem:[%s3 + $0x78] sm:$0xff] %v443
    %476 = vst [vmem:[%s3 + $0x80] sm:$0xff] %v444
    %477 = vst [vmem:[%s3 + $0x88] sm:$0xff] %v445
    %478 = vst [vmem:[%s3 + $0x90] sm:$0xff] %v446
    %479 = vst [vmem:[%s3 + $0x98] sm:$0xff] %v447
    %480 = vst [vmem:[%s3 + $0xa0] sm:$0xff] %v448
    %481 = vst [vmem:[%s3 + $0xa8] sm:$0xff] %v449
    %482 = vst [vmem:[%s3 + $0xb0] sm:$0xff] %v450
    %483 = vst [vmem:[%s3 + $0xb8] sm:$0xff] %v451
    %484 = vst [vmem:[%s3 + $0xc0] sm:$0xff] %v452
    %485 = vst [vmem:[%s3 + $0xc8] sm:$0xff] %v453
    %486 = vst [vmem:[%s3 + $0xd0] sm:$0xff] %v454
    %487 = vst [vmem:[%s3 + $0xd8] sm:$0xff] %v455
    %488 = vst [vmem:[%s3 + $0xe0] sm:$0xff] %v456
    %489 = vst [vmem:[%s3 + $0xe8] sm:$0xff] %v457
    %490 = vst [vmem:[%s3 + $0xf0] sm:$0xff] %v458
    %491 = vst [vmem:[%s3 + $0xf8] sm:$0xff] %v459
    %v492 = vld [vmem:[%s2] sm:$0xff]
    %v493 = vld [vmem:[%s2 + $0x8] sm:$0xff]
    %v494 = vld [vmem:[%s2 + $0x10] sm:$0xff]
    %v495 = vld [vmem:[%s2 + $0x18] sm:$0xff]
    %v496 = vld [vmem:[%s2 + $0x20] sm:$0xff]
    %v497 = vld [vmem:[%s2 + $0x28] sm:$0xff]
    %v498 = vld [vmem:[%s2 + $0x30] sm:$0xff]
    %v499 = vld [vmem:[%s2 + $0x38] sm:$0xff]
    %v500 = vld [vmem:[%s2 + $0x40] sm:$0xff]
    %v501 = vld [vmem:[%s2 + $0x48] sm:$0xff]
    %v502 = vld [vmem:[%s2 + $0x50] sm:$0xff]
    %v503 = vld [vmem:[%s2 + $0x58] sm:$0xff]
    %v504 = vld [vmem:[%s2 + $0x60] sm:$0xff]
    %v505 = vld [vmem:[%s2 + $0x68] sm:$0xff]
    %v506 = vld [vmem:[%s2 + $0x70] sm:$0xff]
    %v507 = vld [vmem:[%s2 + $0x78] sm:$0xff]
    %v508 = vld [vmem:[%s2 + $0x80] sm:$0xff]
    %v509 = vld [vmem:[%s2 + $0x88] sm:$0xff]
    %v510 = vld [vmem:[%s2 + $0x90] sm:$0xff]
    %v511 = vld [vmem:[%s2 + $0x98] sm:$0xff]
    %v512 = vld [vmem:[%s2 + $0xa0] sm:$0xff]
    %v513 = vld [vmem:[%s2 + $0xa8] sm:$0xff]
    %v514 = vld [vmem:[%s2 + $0xb0] sm:$0xff]
    %v515 = vld [vmem:[%s2 + $0xb8] sm:$0xff]
    %v516 = vld [vmem:[%s2 + $0xc0] sm:$0xff]
    %v517 = vld [vmem:[%s2 + $0xc8] sm:$0xff]
    %v518 = vld [vmem:[%s2 + $0xd0] sm:$0xff]
    %v519 = vld [vmem:[%s2 + $0xd8] sm:$0xff]
    %v520 = vld [vmem:[%s2 + $0xe0] sm:$0xff]
    %v521 = vld [vmem:[%s2 + $0xe8] sm:$0xff]
    %v522 = vld [vmem:[%s2 + $0xf0] sm:$0xff]
    %v523 = vld [vmem:[%s2 + $0xf8] sm:$0xff]
    %v524 = vld [vmem:[#allocation2] sm:$0xff]
    %v525 = vld [vmem:[#allocation2 + $0x8] sm:$0xff]
    %v526 = vld [vmem:[#allocation2 + $0x10] sm:$0xff]
    %v527 = vld [vmem:[#allocation2 + $0x18] sm:$0xff]
    %v528 = vld [vmem:[#allocation2 + $0x20] sm:$0xff]
    %v529 = vld [vmem:[#allocation2 + $0x28] sm:$0xff]
    %v530 = vld [vmem:[#allocation2 + $0x30] sm:$0xff]
    %v531 = vld [vmem:[#allocation2 + $0x38] sm:$0xff]
    %v532 = vld [vmem:[#allocation2 + $0x40] sm:$0xff]
    %v533 = vld [vmem:[#allocation2 + $0x48] sm:$0xff]
    %v534 = vld [vmem:[#allocation2 + $0x50] sm:$0xff]
    %v535 = vld [vmem:[#allocation2 + $0x58] sm:$0xff]
    %v536 = vld [vmem:[#allocation2 + $0x60] sm:$0xff]
    %v537 = vld [vmem:[#allocation2 + $0x68] sm:$0xff]
    %v538 = vld [vmem:[#allocation2 + $0x70] sm:$0xff]
    %v539 = vld [vmem:[#allocation2 + $0x78] sm:$0xff]
    %v540 = vld [vmem:[#allocation2 + $0x80] sm:$0xff]
    %v541 = vld [vmem:[#allocation2 + $0x88] sm:$0xff]
    %v542 = vld [vmem:[#allocation2 + $0x90] sm:$0xff]
    %v543 = vld [vmem:[#allocation2 + $0x98] sm:$0xff]
    %v544 = vld [vmem:[#allocation2 + $0xa0] sm:$0xff]
    %v545 = vld [vmem:[#allocation2 + $0xa8] sm:$0xff]
    %v546 = vld [vmem:[#allocation2 + $0xb0] sm:$0xff]
    %v547 = vld [vmem:[#allocation2 + $0xb8] sm:$0xff]
    %v548 = vld [vmem:[#allocation2 + $0xc0] sm:$0xff]
    %v549 = vld [vmem:[#allocation2 + $0xc8] sm:$0xff]
    %v550 = vld [vmem:[#allocation2 + $0xd0] sm:$0xff]
    %v551 = vld [vmem:[#allocation2 + $0xd8] sm:$0xff]
    %v552 = vld [vmem:[#allocation2 + $0xe0] sm:$0xff]
    %v553 = vld [vmem:[#allocation2 + $0xe8] sm:$0xff]
    %v554 = vld [vmem:[#allocation2 + $0xf0] sm:$0xff]
    %v555 = vld [vmem:[#allocation2 + $0xf8] sm:$0xff]
    %v556 = vadd.f32 %v492, %v524
    %v557 = vadd.f32 %v493, %v525
    %v558 = vadd.f32 %v494, %v526
    %v559 = vadd.f32 %v495, %v527
    %v560 = vadd.f32 %v496, %v528
    %v561 = vadd.f32 %v497, %v529
    %v562 = vadd.f32 %v498, %v530
    %v563 = vadd.f32 %v499, %v531
    %v564 = vadd.f32 %v500, %v532
    %v565 = vadd.f32 %v501, %v533
    %v566 = vadd.f32 %v502, %v534
    %v567 = vadd.f32 %v503, %v535
    %v568 = vadd.f32 %v504, %v536
    %v569 = vadd.f32 %v505, %v537
    %v570 = vadd.f32 %v506, %v538
    %v571 = vadd.f32 %v507, %v539
    %v572 = vadd.f32 %v508, %v540
    %v573 = vadd.f32 %v509, %v541
    %v574 = vadd.f32 %v510, %v542
    %v575 = vadd.f32 %v511, %v543
    %v576 = vadd.f32 %v512, %v544
    %v577 = vadd.f32 %v513, %v545
    %v578 = vadd.f32 %v514, %v546
    %v579 = vadd.f32 %v515, %v547
    %v580 = vadd.f32 %v516, %v548
    %v581 = vadd.f32 %v517, %v549
    %v582 = vadd.f32 %v518, %v550
    %v583 = vadd.f32 %v519, %v551
    %v584 = vadd.f32 %v520, %v552
    %v585 = vadd.f32 %v521, %v553
    %v586 = vadd.f32 %v522, %v554
    %v587 = vadd.f32 %v523, %v555
    %588 = vst [vmem:[%s4] sm:$0xff] %v556
    %589 = vst [vmem:[%s4 + $0x8] sm:$0xff] %v557
    %590 = vst [vmem:[%s4 + $0x10] sm:$0xff] %v558
    %591 = vst [vmem:[%s4 + $0x18] sm:$0xff] %v559
    %592 = vst [vmem:[%s4 + $0x20] sm:$0xff] %v560
    %593 = vst [vmem:[%s4 + $0x28] sm:$0xff] %v561
    %594 = vst [vmem:[%s4 + $0x30] sm:$0xff] %v562
    %595 = vst [vmem:[%s4 + $0x38] sm:$0xff] %v563
    %596 = vst [vmem:[%s4 + $0x40] sm:$0xff] %v564
    %597 = vst [vmem:[%s4 + $0x48] sm:$0xff] %v565
    %598 = vst [vmem:[%s4 + $0x50] sm:$0xff] %v566
    %599 = vst [vmem:[%s4 + $0x58] sm:$0xff] %v567
    %600 = vst [vmem:[%s4 + $0x60] sm:$0xff] %v568
    %601 = vst [vmem:[%s4 + $0x68] sm:$0xff] %v569
    %602 = vst [vmem:[%s4 + $0x70] sm:$0xff] %v570
    %603 = vst [vmem:[%s4 + $0x78] sm:$0xff] %v571
    %604 = vst [vmem:[%s4 + $0x80] sm:$0xff] %v572
    %605 = vst [vmem:[%s4 + $0x88] sm:$0xff] %v573
    %606 = vst [vmem:[%s4 + $0x90] sm:$0xff] %v574
    %607 = vst [vmem:[%s4 + $0x98] sm:$0xff] %v575
    %608 = vst [vmem:[%s4 + $0xa0] sm:$0xff] %v576
    %609 = vst [vmem:[%s4 + $0xa8] sm:$0xff] %v577
    %610 = vst [vmem:[%s4 + $0xb0] sm:$0xff] %v578
    %611 = vst [vmem:[%s4 + $0xb8] sm:$0xff] %v579
    %612 = vst [vmem:[%s4 + $0xc0] sm:$0xff] %v580
    %613 = vst [vmem:[%s4 + $0xc8] sm:$0xff] %v581
    %614 = vst [vmem:[%s4 + $0xd0] sm:$0xff] %v582
    %615 = vst [vmem:[%s4 + $0xd8] sm:$0xff] %v583
    %616 = vst [vmem:[%s4 + $0xe0] sm:$0xff] %v584
    %617 = vst [vmem:[%s4 + $0xe8] sm:$0xff] %v585
    %618 = vst [vmem:[%s4 + $0xf0] sm:$0xff] %v586
    %619 = vst [vmem:[%s4 + $0xf8] sm:$0xff] %v587
  $region25: #{_lightgcn_forward.5} parent=0 // pred_fallthru
    _
  // Predicated region
  $region26: #{_lightgcn_forward.5} parent=0 // pred_check
    _
  $region27: #{_lightgcn_forward.5} parent=0 // pred_check_branch
    %621 = sbr.rel (0) target = $region29
  $region28: #{_lightgcn_forward.5} parent=0 // pred_region
    _
  $region29: #{_lightgcn_forward.5} parent=0 // pred_fallthru
    _
  // Predicated region
  $region30: #{_lightgcn_forward.5} parent=0 // pred_check
    _
  $region31: #{_lightgcn_forward.5} parent=0 // pred_check_branch
    %623 = sbr.rel (0) target = $region33
  $region32: #{_lightgcn_forward.5} parent=0 // pred_region
    _
  $region33: #{_lightgcn_forward.5} parent=0 // pred_fallthru
    _
  // Predicated region
  $region34: #{_lightgcn_forward.5} parent=0 // pred_check
    _
  $region35: #{_lightgcn_forward.5} parent=0 // pred_check_branch
    %625 = sbr.rel (0) target = $region37
  $region36: #{_lightgcn_forward.5} parent=0 // pred_region
    _
  $region37: #{_lightgcn_forward.5} parent=0 // pred_fallthru
    _
  // Predicated region
  $region38: #{_lightgcn_forward.5} parent=0 // pred_check
    _
  $region39: #{_lightgcn_forward.5} parent=0 // pred_check_branch
    %627 = sbr.rel (0) target = $region41
  $region40: #{_lightgcn_forward.5} parent=0 // pred_region
    _
  $region41: #{_lightgcn_forward.5} parent=0 // pred_fallthru
    _

</llo_original>
